<compile_context>
chip_gen: v5e
topology: v5e:2x2
jax: 0.10.0
libtpu: 0.0.40
codegen_flags: <defaults>
</compile_context>

<pallas_src>
import functools

import jax
import jax.numpy as jnp
from jax import lax
from jax.experimental import pallas as pl
from jax.experimental.pallas import tpu as pltpu

EPS = 1e-5  # nn.LayerNorm default eps


def _layernorm(x, gamma, beta):
    mu = jnp.mean(x, axis=-1, keepdims=True)
    var = jnp.mean((x - mu) ** 2, axis=-1, keepdims=True)  # biased var, like PyTorch LN
    return (x - mu) / jnp.sqrt(var + EPS) * gamma + beta


def _gelu(x):
    # tanh-approximate GELU (matches the hand-written GELU of the GPT-from-scratch block).
    c = jnp.float32(0.7978845608028654)  # sqrt(2/pi)
    return 0.5 * x * (1.0 + jnp.tanh(c * (x + 0.044715 * x * x * x)))


# ----------------------------------------------------------------------------
# Whole-transformer-stack kernel.
# Grid = (B, L): batch axis parallel (uses both TCs on v7x), layer axis last and
# "arbitrary".  The (S, E) activation is an f32 VMEM scratch accumulator that
# persists across the layer axis.
# ----------------------------------------------------------------------------
def gpt_stack_kernel(x_ref,
                     ln1g_ref, ln1b_ref,
                     wqkv_ref, bqkv_ref,
                     wo_ref, bo_ref,
                     ln2g_ref, ln2b_ref,
                     w1_ref, b1_ref,
                     w2_ref, b2_ref,
                     o_ref,
                     x_acc,
                     *, num_heads):
    l = pl.program_id(1)
    n_layers = pl.num_programs(1)

    # Load the embedding activations into the resident accumulator at layer 0.
    @pl.when(l == 0)
    def _():
        x_acc[...] = x_ref[...]

    x = x_acc[...]                                   # (S, E) float32
    S, E = x.shape
    H = num_heads
    Dh = E // H

    # --- multi-head causal self-attention sub-block ---
    h = _layernorm(x, ln1g_ref[...], ln1b_ref[...])
    qkv = jnp.dot(h.astype(jnp.bfloat16), wqkv_ref[...],
                  preferred_element_type=jnp.float32) + bqkv_ref[...]   # (S, 3E) f32

    # Stack heads once: (H, S, Dh).  Leading-axis stack avoids lane-dim reshapes.
    q3 = jnp.stack([qkv[:, hd * Dh:(hd + 1) * Dh] for hd in range(H)],
                   axis=0).astype(jnp.bfloat16)
    k3 = jnp.stack([qkv[:, E + hd * Dh:E + (hd + 1) * Dh] for hd in range(H)],
                   axis=0).astype(jnp.bfloat16)
    v3 = jnp.stack([qkv[:, 2 * E + hd * Dh:2 * E + (hd + 1) * Dh] for hd in range(H)],
                   axis=0).astype(jnp.bfloat16)

    # Batched, transpose-free score / context matmuls (contract on the head dim).
    scores = jnp.einsum('hqd,hkd->hqk', q3, k3,
                        preferred_element_type=jnp.float32)            # (H, S, S) f32
    scores = scores * (1.0 / float(Dh) ** 0.5)

    row = lax.broadcasted_iota(jnp.int32, (S, S), 0)
    col = lax.broadcasted_iota(jnp.int32, (S, S), 1)
    causal = (row >= col)[None, :, :]                                  # (1, S, S)
    scores = jnp.where(causal, scores, jnp.float32(-1e30))             # finite fill (NaN-safe)

    m = jnp.max(scores, axis=-1, keepdims=True)
    p = jnp.exp(scores - m)
    denom = jnp.sum(p, axis=-1, keepdims=True)
    p = p * pl.reciprocal(denom, approx=True)        # softmax; attn dropout p=0 -> identity

    ctx3 = jnp.einsum('hqk,hkd->hqd', p.astype(jnp.bfloat16), v3,
                      preferred_element_type=jnp.float32)              # (H, S, Dh) f32
    ctx = jnp.concatenate([ctx3[hd] for hd in range(H)], axis=-1)      # (S, E)

    attn = jnp.dot(ctx.astype(jnp.bfloat16), wo_ref[...],
                   preferred_element_type=jnp.float32) + bo_ref[...]
    x = x + attn                                     # residual (shortcut dropout p=0)

    # --- feed-forward sub-block ---
    h2 = _layernorm(x, ln2g_ref[...], ln2b_ref[...])
    f = jnp.dot(h2.astype(jnp.bfloat16), w1_ref[...],
                preferred_element_type=jnp.float32) + b1_ref[...]
    f = _gelu(f)
    f = jnp.dot(f.astype(jnp.bfloat16), w2_ref[...],
                preferred_element_type=jnp.float32) + b2_ref[...]
    x_acc[...] = x + f                               # residual (shortcut dropout p=0)

    # Write the activation back to HBM only once, after the last layer.
    @pl.when(l == n_layers - 1)
    def _():
        o_ref[...] = x_acc[...]


def _vmem_limit_bytes(S, E, Eff):
    # Double-buffered bf16 weight blocks + f32 bias/LN rows + activation blocks/scratch
    # + headroom for scores / QKV / FF intermediates.
    w = 2 * 2 * (3 * E * E + E * E + E * Eff + Eff * E)     # 2 buffers, bf16
    b = 2 * 4 * (3 * E + E + Eff + E + 4 * E)
    a = 5 * S * E * 4 + S * (3 * E + Eff) * 4
    est = w + b + a + (8 << 20)
    # TODO(synk): for configs whose estimate exceeds 64 MiB (v7x VMEM), tile the FF
    # (Eff) axis with an extra grid dimension instead of raising the limit further.
    return int(min(max(est, 32 << 20), 64 << 20))


def transformer_stack(x, p, *, num_heads):
    """x: (B, S, E) float32, p: dict of stacked (L, ...) block params."""
    B, S, E = x.shape
    L = p["wqkv"].shape[0]
    Eff = p["w1"].shape[-1]

    act_spec = pl.BlockSpec((pl.Squeezed(), S, E), lambda b, l: (b, 0, 0))

    def wspec(d1, d2):
        return pl.BlockSpec((pl.Squeezed(), d1, d2), lambda b, l: (l, 0, 0))

    in_specs = [
        act_spec,
        wspec(1, E), wspec(1, E),                      # ln1 gamma/beta
        wspec(E, 3 * E), wspec(1, 3 * E),              # fused Wqkv, bqkv
        wspec(E, E), wspec(1, E),                      # Wo, bo
        wspec(1, E), wspec(1, E),                      # ln2 gamma/beta
        wspec(E, Eff), wspec(1, Eff),                  # W1, b1
        wspec(Eff, E), wspec(1, E),                    # W2, b2
    ]

    return pl.pallas_call(
        functools.partial(gpt_stack_kernel, num_heads=num_heads),
        out_shape=jax.ShapeDtypeStruct((B, S, E), jnp.float32),
        grid_spec=pltpu.PrefetchScalarGridSpec(
            num_scalar_prefetch=0,
            grid=(B, L),
            in_specs=in_specs,
            out_specs=act_spec,
            scratch_shapes=[pltpu.VMEM((S, E), jnp.float32)],   # resident activation
        ),
        compiler_params=pltpu.CompilerParams(
            dimension_semantics=("parallel", "arbitrary"),
            vmem_limit_bytes=_vmem_limit_bytes(S, E, Eff),
        ),
    )(x,
      p["ln1_g"], p["ln1_b"],
      p["wqkv"], p["bqkv"],
      p["wo"], p["bo"],
      p["ln2_g"], p["ln2_b"],
      p["w1"], p["b1"],
      p["w2"], p["b2"])


# ----------------------------------------------------------------------------
# Full model forward.
# ----------------------------------------------------------------------------
def gpt_forward(in_idx, params, *, num_heads):
    B, S = in_idx.shape
    # Embedding gathers are pure glue (table lookups), done in plain JAX.
    tok = params["tok_emb"][in_idx]                      # (B, S, E)
    pos = params["pos_emb"][:S][None, :, :]              # (1, S, E) broadcast over batch
    x = (tok + pos).astype(jnp.float32)
    # drop_emb(p=0.0) == identity
    x = transformer_stack(x, params["stack"], num_heads=num_heads)

    # Final LayerNorm on the last token + Linear(emb_dim, 2) head in plain JAX
    # (output lane width 2 -> would only cause masked partial stores in a kernel).
    x_last = x[:, -1, :]                                  # (B, E)
    mu = jnp.mean(x_last, axis=-1, keepdims=True)
    var = jnp.mean((x_last - mu) ** 2, axis=-1, keepdims=True)
    h = (x_last - mu) / jnp.sqrt(var + EPS) * params["fn_g"] + params["fn_b"]
    return h @ params["out_w"] + params["out_b"]          # (B, 2) float32


# ----------------------------------------------------------------------------
# Deterministic parameter construction (synthetic; shapes from __init__).
# Linear weights are pre-transposed to (in, out); matmul weights stored in bf16,
# LayerNorm params / biases / embeddings kept in f32.
# ----------------------------------------------------------------------------
def init_params(key, cfg):
    E = cfg["emb_dim"]
    L = cfg["n_layers"]
    Eff = 4 * E
    ks = jax.random.split(key, 8)

    def w(k, shape, scale=0.02, dtype=jnp.bfloat16):
        return (scale * jax.random.normal(k, shape, dtype=jnp.float32)).astype(dtype)

    stack = dict(
        ln1_g=jnp.ones((L, 1, E), jnp.float32), ln1_b=jnp.zeros((L, 1, E), jnp.float32),
        wqkv=w(ks[0], (L, E, 3 * E)), bqkv=jnp.zeros((L, 1, 3 * E), jnp.float32),
        wo=w(ks[1], (L, E, E)), bo=jnp.zeros((L, 1, E), jnp.float32),
        ln2_g=jnp.ones((L, 1, E), jnp.float32), ln2_b=jnp.zeros((L, 1, E), jnp.float32),
        w1=w(ks[2], (L, E, Eff)), b1=jnp.zeros((L, 1, Eff), jnp.float32),
        w2=w(ks[3], (L, Eff, E)), b2=jnp.zeros((L, 1, E), jnp.float32),
    )
    return dict(
        tok_emb=w(ks[4], (cfg["vocab_size"], E), dtype=jnp.float32),
        pos_emb=w(ks[5], (cfg["context_length"], E), dtype=jnp.float32),
        stack=stack,
        fn_g=jnp.ones((E,), jnp.float32), fn_b=jnp.zeros((E,), jnp.float32),
        out_w=w(ks[6], (E, 2), dtype=jnp.float32),
        out_b=jnp.zeros((2,), jnp.float32),
    )


if __name__ == "__main__":
    cfg = dict(vocab_size=64, context_length=16, emb_dim=32,
               n_heads=4, n_layers=2, dropout=0.0)
    B, S = 2, 8

    key = jax.random.PRNGKey(0)
    kp, kx = jax.random.split(key)
    params = init_params(kp, cfg)
    in_idx = jax.random.randint(kx, (B, S), 0, cfg["vocab_size"], dtype=jnp.int32)

    fwd = jax.jit(functools.partial(gpt_forward, num_heads=cfg["n_heads"]))
    logits = jax.block_until_ready(fwd(in_idx, params))
    assert logits.shape == (B, 2) and logits.dtype == jnp.float32
    print("KERNEL_OK")
</pallas_src>

<mosaic_0001>
module attributes {stable_mosaic.version = 11 : i64} {
  func.func @gpt_stack_kernel(%arg0: i32, %arg1: i32, %arg2: memref<1x8x32xf32, #tpu.memory_space<vmem>>, %arg3: memref<1x1x32xf32, #tpu.memory_space<vmem>>, %arg4: memref<1x1x32xf32, #tpu.memory_space<vmem>>, %arg5: memref<1x32x96xbf16, #tpu.memory_space<vmem>>, %arg6: memref<1x1x96xf32, #tpu.memory_space<vmem>>, %arg7: memref<1x32x32xbf16, #tpu.memory_space<vmem>>, %arg8: memref<1x1x32xf32, #tpu.memory_space<vmem>>, %arg9: memref<1x1x32xf32, #tpu.memory_space<vmem>>, %arg10: memref<1x1x32xf32, #tpu.memory_space<vmem>>, %arg11: memref<1x32x128xbf16, #tpu.memory_space<vmem>>, %arg12: memref<1x1x128xf32, #tpu.memory_space<vmem>>, %arg13: memref<1x128x32xbf16, #tpu.memory_space<vmem>>, %arg14: memref<1x1x32xf32, #tpu.memory_space<vmem>>, %arg15: memref<1x8x32xf32, #tpu.memory_space<vmem>>, %arg16: memref<8x32xf32, #tpu.memory_space<vmem>>) attributes {dimension_semantics = [#tpu.dimension_semantics<parallel>, #tpu.dimension_semantics<arbitrary>], iteration_bounds = array<i64: 2, 2>, scalar_prefetch = 0 : i64, scratch_operands = 1 : i64, tpu.core_type = #tpu.core_type<tc>, window_params = [{transform_indices = @transform_0, window_bounds = array<i64: 1, 8, 32>}, {transform_indices = @transform_1, window_bounds = array<i64: 1, 1, 32>}, {transform_indices = @transform_2, window_bounds = array<i64: 1, 1, 32>}, {transform_indices = @transform_3, window_bounds = array<i64: 1, 32, 96>}, {transform_indices = @transform_4, window_bounds = array<i64: 1, 1, 96>}, {transform_indices = @transform_5, window_bounds = array<i64: 1, 32, 32>}, {transform_indices = @transform_6, window_bounds = array<i64: 1, 1, 32>}, {transform_indices = @transform_7, window_bounds = array<i64: 1, 1, 32>}, {transform_indices = @transform_8, window_bounds = array<i64: 1, 1, 32>}, {transform_indices = @transform_9, window_bounds = array<i64: 1, 32, 128>}, {transform_indices = @transform_10, window_bounds = array<i64: 1, 1, 128>}, {transform_indices = @transform_11, window_bounds = array<i64: 1, 128, 32>}, {transform_indices = @transform_12, window_bounds = array<i64: 1, 1, 32>}, {transform_indices = @transform_13, window_bounds = array<i64: 1, 8, 32>}]} {
    %c0_i32 = arith.constant 0 : i32
    %0 = arith.cmpi eq, %arg1, %c0_i32 : i32
    %1 = arith.extui %0 : i1 to i32
    %c0_i32_0 = arith.constant 0 : i32
    %2 = arith.cmpi ne, %1, %c0_i32_0 : i32
    scf.if %2 {
      %c0_64 = arith.constant 0 : index
      %c0_65 = arith.constant 0 : index
      %c0_66 = arith.constant 0 : index
      %169 = vector.load %arg2[%c0_64, %c0_65, %c0_66] : memref<1x8x32xf32, #tpu.memory_space<vmem>>, vector<1x8x32xf32>
      %170 = vector.shape_cast %169 : vector<1x8x32xf32> to vector<8x32xf32>
      %c0_67 = arith.constant 0 : index
      %c0_68 = arith.constant 0 : index
      %171 = vector.load %arg16[%c0_67, %c0_68] : memref<8x32xf32, #tpu.memory_space<vmem>>, vector<8x32xf32>
      tpu.vector_store %arg16[%c0_67, %c0_68], %170 {strides = array<i32>} : memref<8x32xf32, #tpu.memory_space<vmem>>, vector<8x32xf32>,
    } else {
    }
    %c0 = arith.constant 0 : index
    %c0_1 = arith.constant 0 : index
    %3 = vector.load %arg16[%c0, %c0_1] : memref<8x32xf32, #tpu.memory_space<vmem>>, vector<8x32xf32>
    %c0_2 = arith.constant 0 : index
    %c0_3 = arith.constant 0 : index
    %c0_4 = arith.constant 0 : index
    %4 = vector.load %arg3[%c0_2, %c0_3, %c0_4] : memref<1x1x32xf32, #tpu.memory_space<vmem>>, vector<1x1x32xf32>
    %5 = vector.shape_cast %4 : vector<1x1x32xf32> to vector<1x32xf32>
    %c0_5 = arith.constant 0 : index
    %c0_6 = arith.constant 0 : index
    %c0_7 = arith.constant 0 : index
    %6 = vector.load %arg4[%c0_5, %c0_6, %c0_7] : memref<1x1x32xf32, #tpu.memory_space<vmem>>, vector<1x1x32xf32>
    %7 = vector.shape_cast %6 : vector<1x1x32xf32> to vector<1x32xf32>
    %cst = arith.constant dense<0.000000e+00> : vector<8xf32>
    %8 = vector.multi_reduction <add>, %3, %cst [1] : vector<8x32xf32> to vector<8xf32>
    %9 = vector.shape_cast %8 : vector<8xf32> to vector<8x1xf32>
    %cst_8 = arith.constant 3.200000e+01 : f32
    %10 = vector.broadcast %cst_8 : f32 to vector<8x1xf32>
    %11 = arith.divf %9, %10 : vector<8x1xf32>
    %12 = vector.broadcast %11 : vector<8x1xf32> to vector<8x32xf32>
    %13 = arith.subf %3, %12 : vector<8x32xf32>
    %14 = arith.mulf %13, %13 : vector<8x32xf32>
    %cst_9 = arith.constant dense<0.000000e+00> : vector<8xf32>
    %15 = vector.multi_reduction <add>, %14, %cst_9 [1] : vector<8x32xf32> to vector<8xf32>
    %16 = vector.shape_cast %15 : vector<8xf32> to vector<8x1xf32>
    %cst_10 = arith.constant 3.200000e+01 : f32
    %17 = vector.broadcast %cst_10 : f32 to vector<8x1xf32>
    %18 = arith.divf %16, %17 : vector<8x1xf32>
    %19 = vector.broadcast %11 : vector<8x1xf32> to vector<8x32xf32>
    %20 = arith.subf %3, %19 : vector<8x32xf32>
    %cst_11 = arith.constant 9.99999974E-6 : f32
    %21 = vector.broadcast %cst_11 : f32 to vector<8x1xf32>
    %22 = arith.addf %18, %21 : vector<8x1xf32>
    %23 = math.sqrt %22 : vector<8x1xf32>
    %24 = vector.broadcast %23 : vector<8x1xf32> to vector<8x32xf32>
    %25 = arith.divf %20, %24 : vector<8x32xf32>
    %26 = vector.broadcast %5 : vector<1x32xf32> to vector<8x32xf32>
    %27 = arith.mulf %25, %26 : vector<8x32xf32>
    %28 = vector.broadcast %7 : vector<1x32xf32> to vector<8x32xf32>
    %29 = arith.addf %27, %28 : vector<8x32xf32>
    %30 = arith.truncf %29 : vector<8x32xf32> to vector<8x32xbf16>
    %c0_12 = arith.constant 0 : index
    %c0_13 = arith.constant 0 : index
    %c0_14 = arith.constant 0 : index
    %31 = vector.load %arg5[%c0_12, %c0_13, %c0_14] : memref<1x32x96xbf16, #tpu.memory_space<vmem>>, vector<1x32x96xbf16>
    %32 = vector.shape_cast %31 : vector<1x32x96xbf16> to vector<32x96xbf16>
    %cst_15 = arith.constant dense<0.000000e+00> : vector<8x96xf32>
    %33 = tpu.matmul %30, %32, %cst_15 {dimension_numbers = #tpu.dot_dimension_numbers<[1], [0], [0], [1], [0, 0, 1, 1], [], []>} : vector<8x32xbf16>, vector<32x96xbf16>, vector<8x96xf32> -> vector<8x96xf32>
    %c0_16 = arith.constant 0 : index
    %c0_17 = arith.constant 0 : index
    %c0_18 = arith.constant 0 : index
    %34 = vector.load %arg6[%c0_16, %c0_17, %c0_18] : memref<1x1x96xf32, #tpu.memory_space<vmem>>, vector<1x1x96xf32>
    %35 = vector.shape_cast %34 : vector<1x1x96xf32> to vector<1x96xf32>
    %36 = vector.broadcast %35 : vector<1x96xf32> to vector<8x96xf32>
    %37 = arith.addf %33, %36 : vector<8x96xf32>
    %38 = vector.extract_strided_slice %37 {offsets = [0, 0], sizes = [8, 8], strides = [1, 1]} : vector<8x96xf32> to vector<8x8xf32>
    %39 = vector.extract_strided_slice %37 {offsets = [0, 8], sizes = [8, 8], strides = [1, 1]} : vector<8x96xf32> to vector<8x8xf32>
    %40 = vector.extract_strided_slice %37 {offsets = [0, 16], sizes = [8, 8], strides = [1, 1]} : vector<8x96xf32> to vector<8x8xf32>
    %41 = vector.extract_strided_slice %37 {offsets = [0, 24], sizes = [8, 8], strides = [1, 1]} : vector<8x96xf32> to vector<8x8xf32>
    %42 = vector.shape_cast %38 : vector<8x8xf32> to vector<1x8x8xf32>
    %43 = vector.shape_cast %39 : vector<8x8xf32> to vector<1x8x8xf32>
    %44 = vector.shape_cast %40 : vector<8x8xf32> to vector<1x8x8xf32>
    %45 = vector.shape_cast %41 : vector<8x8xf32> to vector<1x8x8xf32>
    %46 = tpu.concatenate %42, %43, %44, %45 in 0 : vector<1x8x8xf32>, vector<1x8x8xf32>, vector<1x8x8xf32>, vector<1x8x8xf32> -> vector<4x8x8xf32>
    %47 = arith.truncf %46 : vector<4x8x8xf32> to vector<4x8x8xbf16>
    %48 = vector.extract_strided_slice %37 {offsets = [0, 32], sizes = [8, 8], strides = [1, 1]} : vector<8x96xf32> to vector<8x8xf32>
    %49 = vector.extract_strided_slice %37 {offsets = [0, 40], sizes = [8, 8], strides = [1, 1]} : vector<8x96xf32> to vector<8x8xf32>
    %50 = vector.extract_strided_slice %37 {offsets = [0, 48], sizes = [8, 8], strides = [1, 1]} : vector<8x96xf32> to vector<8x8xf32>
    %51 = vector.extract_strided_slice %37 {offsets = [0, 56], sizes = [8, 8], strides = [1, 1]} : vector<8x96xf32> to vector<8x8xf32>
    %52 = vector.shape_cast %48 : vector<8x8xf32> to vector<1x8x8xf32>
    %53 = vector.shape_cast %49 : vector<8x8xf32> to vector<1x8x8xf32>
    %54 = vector.shape_cast %50 : vector<8x8xf32> to vector<1x8x8xf32>
    %55 = vector.shape_cast %51 : vector<8x8xf32> to vector<1x8x8xf32>
    %56 = tpu.concatenate %52, %53, %54, %55 in 0 : vector<1x8x8xf32>, vector<1x8x8xf32>, vector<1x8x8xf32>, vector<1x8x8xf32> -> vector<4x8x8xf32>
    %57 = arith.truncf %56 : vector<4x8x8xf32> to vector<4x8x8xbf16>
    %58 = vector.extract_strided_slice %37 {offsets = [0, 64], sizes = [8, 8], strides = [1, 1]} : vector<8x96xf32> to vector<8x8xf32>
    %59 = vector.extract_strided_slice %37 {offsets = [0, 72], sizes = [8, 8], strides = [1, 1]} : vector<8x96xf32> to vector<8x8xf32>
    %60 = vector.extract_strided_slice %37 {offsets = [0, 80], sizes = [8, 8], strides = [1, 1]} : vector<8x96xf32> to vector<8x8xf32>
    %61 = vector.extract_strided_slice %37 {offsets = [0, 88], sizes = [8, 8], strides = [1, 1]} : vector<8x96xf32> to vector<8x8xf32>
    %62 = vector.shape_cast %58 : vector<8x8xf32> to vector<1x8x8xf32>
    %63 = vector.shape_cast %59 : vector<8x8xf32> to vector<1x8x8xf32>
    %64 = vector.shape_cast %60 : vector<8x8xf32> to vector<1x8x8xf32>
    %65 = vector.shape_cast %61 : vector<8x8xf32> to vector<1x8x8xf32>
    %66 = tpu.concatenate %62, %63, %64, %65 in 0 : vector<1x8x8xf32>, vector<1x8x8xf32>, vector<1x8x8xf32>, vector<1x8x8xf32> -> vector<4x8x8xf32>
    %67 = arith.truncf %66 : vector<4x8x8xf32> to vector<4x8x8xbf16>
    "tpu.trace_start"() <{level = 10 : i32, message = "hqd,hkd->hqk"}> : () -> ()
    %cst_19 = arith.constant dense<0.000000e+00> : vector<4x8x8xf32>
    %68 = tpu.matmul %47, %57, %cst_19 {dimension_numbers = #tpu.dot_dimension_numbers<[2], [2], [1], [1], [0, 0, 0, 1, 1, 1], [0], [0]>} : vector<4x8x8xbf16>, vector<4x8x8xbf16>, vector<4x8x8xf32> -> vector<4x8x8xf32>
    "tpu.trace_stop"() : () -> ()
    %cst_20 = arith.constant 0.353553385 : f32
    %69 = vector.broadcast %cst_20 : f32 to vector<4x8x8xf32>
    %70 = arith.mulf %68, %69 : vector<4x8x8xf32>
    %71 = tpu.iota {dimensions = array<i32: 0>} : vector<8x8xi32>
    %72 = tpu.iota {dimensions = array<i32: 1>} : vector<8x8xi32>
    %73 = arith.cmpi sge, %71, %72 : vector<8x8xi32>
    %74 = vector.shape_cast %73 : vector<8x8xi1> to vector<1x8x8xi1>
    %cst_21 = arith.constant -1.000000e+30 : f32
    %75 = vector.shape_cast %74 : vector<1x8x8xi1> to vector<1x8x8xi1>
    %76 = vector.broadcast %75 : vector<1x8x8xi1> to vector<4x8x8xi1>
    %77 = vector.broadcast %cst_21 : f32 to vector<4x8x8xf32>
    %78 = arith.select %76, %70, %77 : vector<4x8x8xi1>, vector<4x8x8xf32>
    %cst_22 = arith.constant dense<0xFF800000> : vector<4x8xf32>
    %79 = vector.multi_reduction <maximumf>, %78, %cst_22 [2] : vector<4x8x8xf32> to vector<4x8xf32>
    %80 = vector.shape_cast %79 : vector<4x8xf32> to vector<4x8x1xf32>
    %81 = vector.broadcast %80 : vector<4x8x1xf32> to vector<4x8x8xf32>
    %82 = arith.subf %78, %81 : vector<4x8x8xf32>
    %83 = math.exp %82 : vector<4x8x8xf32>
    %cst_23 = arith.constant dense<0.000000e+00> : vector<4x8xf32>
    %84 = vector.multi_reduction <add>, %83, %cst_23 [2] : vector<4x8x8xf32> to vector<4x8xf32>
    %85 = vector.shape_cast %84 : vector<4x8xf32> to vector<4x8x1xf32>
    %86 = tpu.reciprocal %85 {approx = true} : vector<4x8x1xf32> -> vector<4x8x1xf32>
    %87 = vector.broadcast %86 : vector<4x8x1xf32> to vector<4x8x8xf32>
    %88 = arith.mulf %83, %87 : vector<4x8x8xf32>
    %89 = arith.truncf %88 : vector<4x8x8xf32> to vector<4x8x8xbf16>
    "tpu.trace_start"() <{level = 10 : i32, message = "hqk,hkd->hqd"}> : () -> ()
    %cst_24 = arith.constant dense<0.000000e+00> : vector<4x8x8xf32>
    %90 = tpu.matmul %89, %67, %cst_24 {dimension_numbers = #tpu.dot_dimension_numbers<[2], [1], [1], [2], [0, 0, 0, 1, 1, 2], [0], [0]>} : vector<4x8x8xbf16>, vector<4x8x8xbf16>, vector<4x8x8xf32> -> vector<4x8x8xf32>
    "tpu.trace_stop"() : () -> ()
    %91 = vector.extract_strided_slice %90 {offsets = [0, 0, 0], sizes = [1, 8, 8], strides = [1, 1, 1]} : vector<4x8x8xf32> to vector<1x8x8xf32>
    %92 = vector.shape_cast %91 : vector<1x8x8xf32> to vector<8x8xf32>
    %93 = vector.extract_strided_slice %90 {offsets = [1, 0, 0], sizes = [1, 8, 8], strides = [1, 1, 1]} : vector<4x8x8xf32> to vector<1x8x8xf32>
    %94 = vector.shape_cast %93 : vector<1x8x8xf32> to vector<8x8xf32>
    %95 = vector.extract_strided_slice %90 {offsets = [2, 0, 0], sizes = [1, 8, 8], strides = [1, 1, 1]} : vector<4x8x8xf32> to vector<1x8x8xf32>
    %96 = vector.shape_cast %95 : vector<1x8x8xf32> to vector<8x8xf32>
    %97 = vector.extract_strided_slice %90 {offsets = [3, 0, 0], sizes = [1, 8, 8], strides = [1, 1, 1]} : vector<4x8x8xf32> to vector<1x8x8xf32>
    %98 = vector.shape_cast %97 : vector<1x8x8xf32> to vector<8x8xf32>
    %99 = tpu.concatenate %92, %94, %96, %98 in 1 : vector<8x8xf32>, vector<8x8xf32>, vector<8x8xf32>, vector<8x8xf32> -> vector<8x32xf32>
    %100 = arith.truncf %99 : vector<8x32xf32> to vector<8x32xbf16>
    %c0_25 = arith.constant 0 : index
    %c0_26 = arith.constant 0 : index
    %c0_27 = arith.constant 0 : index
    %101 = vector.load %arg7[%c0_25, %c0_26, %c0_27] : memref<1x32x32xbf16, #tpu.memory_space<vmem>>, vector<1x32x32xbf16>
    %102 = vector.shape_cast %101 : vector<1x32x32xbf16> to vector<32x32xbf16>
    %cst_28 = arith.constant dense<0.000000e+00> : vector<8x32xf32>
    %103 = tpu.matmul %100, %102, %cst_28 {dimension_numbers = #tpu.dot_dimension_numbers<[1], [0], [0], [1], [0, 0, 1, 1], [], []>} : vector<8x32xbf16>, vector<32x32xbf16>, vector<8x32xf32> -> vector<8x32xf32>
    %c0_29 = arith.constant 0 : index
    %c0_30 = arith.constant 0 : index
    %c0_31 = arith.constant 0 : index
    %104 = vector.load %arg8[%c0_29, %c0_30, %c0_31] : memref<1x1x32xf32, #tpu.memory_space<vmem>>, vector<1x1x32xf32>
    %105 = vector.shape_cast %104 : vector<1x1x32xf32> to vector<1x32xf32>
    %106 = vector.broadcast %105 : vector<1x32xf32> to vector<8x32xf32>
    %107 = arith.addf %103, %106 : vector<8x32xf32>
    %108 = arith.addf %3, %107 : vector<8x32xf32>
    %c0_32 = arith.constant 0 : index
    %c0_33 = arith.constant 0 : index
    %c0_34 = arith.constant 0 : index
    %109 = vector.load %arg9[%c0_32, %c0_33, %c0_34] : memref<1x1x32xf32, #tpu.memory_space<vmem>>, vector<1x1x32xf32>
    %110 = vector.shape_cast %109 : vector<1x1x32xf32> to vector<1x32xf32>
    %c0_35 = arith.constant 0 : index
    %c0_36 = arith.constant 0 : index
    %c0_37 = arith.constant 0 : index
    %111 = vector.load %arg10[%c0_35, %c0_36, %c0_37] : memref<1x1x32xf32, #tpu.memory_space<vmem>>, vector<1x1x32xf32>
    %112 = vector.shape_cast %111 : vector<1x1x32xf32> to vector<1x32xf32>
    %cst_38 = arith.constant dense<0.000000e+00> : vector<8xf32>
    %113 = vector.multi_reduction <add>, %108, %cst_38 [1] : vector<8x32xf32> to vector<8xf32>
    %114 = vector.shape_cast %113 : vector<8xf32> to vector<8x1xf32>
    %cst_39 = arith.constant 3.200000e+01 : f32
    %115 = vector.broadcast %cst_39 : f32 to vector<8x1xf32>
    %116 = arith.divf %114, %115 : vector<8x1xf32>
    %117 = vector.broadcast %116 : vector<8x1xf32> to vector<8x32xf32>
    %118 = arith.subf %108, %117 : vector<8x32xf32>
    %119 = arith.mulf %118, %118 : vector<8x32xf32>
    %cst_40 = arith.constant dense<0.000000e+00> : vector<8xf32>
    %120 = vector.multi_reduction <add>, %119, %cst_40 [1] : vector<8x32xf32> to vector<8xf32>
    %121 = vector.shape_cast %120 : vector<8xf32> to vector<8x1xf32>
    %cst_41 = arith.constant 3.200000e+01 : f32
    %122 = vector.broadcast %cst_41 : f32 to vector<8x1xf32>
    %123 = arith.divf %121, %122 : vector<8x1xf32>
    %124 = vector.broadcast %116 : vector<8x1xf32> to vector<8x32xf32>
    %125 = arith.subf %108, %124 : vector<8x32xf32>
    %cst_42 = arith.constant 9.99999974E-6 : f32
    %126 = vector.broadcast %cst_42 : f32 to vector<8x1xf32>
    %127 = arith.addf %123, %126 : vector<8x1xf32>
    %128 = math.sqrt %127 : vector<8x1xf32>
    %129 = vector.broadcast %128 : vector<8x1xf32> to vector<8x32xf32>
    %130 = arith.divf %125, %129 : vector<8x32xf32>
    %131 = vector.broadcast %110 : vector<1x32xf32> to vector<8x32xf32>
    %132 = arith.mulf %130, %131 : vector<8x32xf32>
    %133 = vector.broadcast %112 : vector<1x32xf32> to vector<8x32xf32>
    %134 = arith.addf %132, %133 : vector<8x32xf32>
    %135 = arith.truncf %134 : vector<8x32xf32> to vector<8x32xbf16>
    %c0_43 = arith.constant 0 : index
    %c0_44 = arith.constant 0 : index
    %c0_45 = arith.constant 0 : index
    %136 = vector.load %arg11[%c0_43, %c0_44, %c0_45] : memref<1x32x128xbf16, #tpu.memory_space<vmem>>, vector<1x32x128xbf16>
    %137 = vector.shape_cast %136 : vector<1x32x128xbf16> to vector<32x128xbf16>
    %cst_46 = arith.constant dense<0.000000e+00> : vector<8x128xf32>
    %138 = tpu.matmul %135, %137, %cst_46 {dimension_numbers = #tpu.dot_dimension_numbers<[1], [0], [0], [1], [0, 0, 1, 1], [], []>} : vector<8x32xbf16>, vector<32x128xbf16>, vector<8x128xf32> -> vector<8x128xf32>
    %c0_47 = arith.constant 0 : index
    %c0_48 = arith.constant 0 : index
    %c0_49 = arith.constant 0 : index
    %139 = vector.load %arg12[%c0_47, %c0_48, %c0_49] : memref<1x1x128xf32, #tpu.memory_space<vmem>>, vector<1x1x128xf32>
    %140 = vector.shape_cast %139 : vector<1x1x128xf32> to vector<1x128xf32>
    %141 = vector.broadcast %140 : vector<1x128xf32> to vector<8x128xf32>
    %142 = arith.addf %138, %141 : vector<8x128xf32>
    %cst_50 = arith.constant 5.000000e-01 : f32
    %143 = vector.broadcast %cst_50 : f32 to vector<8x128xf32>
    %144 = arith.mulf %143, %142 : vector<8x128xf32>
    %cst_51 = arith.constant 4.471500e-02 : f32
    %145 = vector.broadcast %cst_51 : f32 to vector<8x128xf32>
    %146 = arith.mulf %145, %142 : vector<8x128xf32>
    %147 = arith.mulf %146, %142 : vector<8x128xf32>
    %148 = arith.mulf %147, %142 : vector<8x128xf32>
    %149 = arith.addf %142, %148 : vector<8x128xf32>
    %cst_52 = arith.constant 0.797884583 : f32
    %150 = vector.broadcast %cst_52 : f32 to vector<8x128xf32>
    %151 = arith.mulf %150, %149 : vector<8x128xf32>
    %152 = math.tanh %151 : vector<8x128xf32>
    %cst_53 = arith.constant 1.000000e+00 : f32
    %153 = vector.broadcast %cst_53 : f32 to vector<8x128xf32>
    %154 = arith.addf %153, %152 : vector<8x128xf32>
    %155 = arith.mulf %144, %154 : vector<8x128xf32>
    %156 = arith.truncf %155 : vector<8x128xf32> to vector<8x128xbf16>
    %c0_54 = arith.constant 0 : index
    %c0_55 = arith.constant 0 : index
    %c0_56 = arith.constant 0 : index
    %157 = vector.load %arg13[%c0_54, %c0_55, %c0_56] : memref<1x128x32xbf16, #tpu.memory_space<vmem>>, vector<1x128x32xbf16>
    %158 = vector.shape_cast %157 : vector<1x128x32xbf16> to vector<128x32xbf16>
    %cst_57 = arith.constant dense<0.000000e+00> : vector<8x32xf32>
    %159 = tpu.matmul %156, %158, %cst_57 {dimension_numbers = #tpu.dot_dimension_numbers<[1], [0], [0], [1], [0, 0, 1, 1], [], []>} : vector<8x128xbf16>, vector<128x32xbf16>, vector<8x32xf32> -> vector<8x32xf32>
    %c0_58 = arith.constant 0 : index
    %c0_59 = arith.constant 0 : index
    %c0_60 = arith.constant 0 : index
    %160 = vector.load %arg14[%c0_58, %c0_59, %c0_60] : memref<1x1x32xf32, #tpu.memory_space<vmem>>, vector<1x1x32xf32>
    %161 = vector.shape_cast %160 : vector<1x1x32xf32> to vector<1x32xf32>
    %162 = vector.broadcast %161 : vector<1x32xf32> to vector<8x32xf32>
    %163 = arith.addf %159, %162 : vector<8x32xf32>
    %164 = arith.addf %108, %163 : vector<8x32xf32>
    %c0_61 = arith.constant 0 : index
    %c0_62 = arith.constant 0 : index
    %165 = vector.load %arg16[%c0_61, %c0_62] : memref<8x32xf32, #tpu.memory_space<vmem>>, vector<8x32xf32>
    tpu.vector_store %arg16[%c0_61, %c0_62], %164 {strides = array<i32>} : memref<8x32xf32, #tpu.memory_space<vmem>>, vector<8x32xf32>,
    %c1_i32 = arith.constant 1 : i32
    %166 = arith.cmpi eq, %arg1, %c1_i32 : i32
    %167 = arith.extui %166 : i1 to i32
    %c0_i32_63 = arith.constant 0 : i32
    %168 = arith.cmpi ne, %167, %c0_i32_63 : i32
    scf.if %168 {
      %c0_64 = arith.constant 0 : index
      %c0_65 = arith.constant 0 : index
      %169 = vector.load %arg16[%c0_64, %c0_65] : memref<8x32xf32, #tpu.memory_space<vmem>>, vector<8x32xf32>
      %c0_66 = arith.constant 0 : index
      %c0_67 = arith.constant 0 : index
      %c0_68 = arith.constant 0 : index
      %170 = vector.load %arg15[%c0_66, %c0_67, %c0_68] : memref<1x8x32xf32, #tpu.memory_space<vmem>>, vector<1x8x32xf32>
      %171 = vector.shape_cast %170 : vector<1x8x32xf32> to vector<8x32xf32>
      %172 = vector.shape_cast %169 : vector<8x32xf32> to vector<1x8x32xf32>
      tpu.vector_store %arg15[%c0_66, %c0_67, %c0_68], %172 {strides = array<i32>} : memref<1x8x32xf32, #tpu.memory_space<vmem>>, vector<1x8x32xf32>,
    } else {
    }
    return
  }
  func.func @transform_0(%arg0: i32, %arg1: i32) -> (i32, i32, i32) {
    %c0_i32 = arith.constant 0 : i32
    %c0_i32_0 = arith.constant 0 : i32
    %c0_i32_1 = arith.constant 0 : i32
    return %arg0, %c0_i32, %c0_i32_0 : i32, i32, i32
  }
  func.func @transform_1(%arg0: i32, %arg1: i32) -> (i32, i32, i32) {
    %c0_i32 = arith.constant 0 : i32
    %c0_i32_0 = arith.constant 0 : i32
    %c0_i32_1 = arith.constant 0 : i32
    return %arg1, %c0_i32, %c0_i32_0 : i32, i32, i32
  }
  func.func @transform_2(%arg0: i32, %arg1: i32) -> (i32, i32, i32) {
    %c0_i32 = arith.constant 0 : i32
    %c0_i32_0 = arith.constant 0 : i32
    %c0_i32_1 = arith.constant 0 : i32
    return %arg1, %c0_i32, %c0_i32_0 : i32, i32, i32
  }
  func.func @transform_3(%arg0: i32, %arg1: i32) -> (i32, i32, i32) {
    %c0_i32 = arith.constant 0 : i32
    %c0_i32_0 = arith.constant 0 : i32
    %c0_i32_1 = arith.constant 0 : i32
    return %arg1, %c0_i32, %c0_i32_0 : i32, i32, i32
  }
  func.func @transform_4(%arg0: i32, %arg1: i32) -> (i32, i32, i32) {
    %c0_i32 = arith.constant 0 : i32
    %c0_i32_0 = arith.constant 0 : i32
    %c0_i32_1 = arith.constant 0 : i32
    return %arg1, %c0_i32, %c0_i32_0 : i32, i32, i32
  }
  func.func @transform_5(%arg0: i32, %arg1: i32) -> (i32, i32, i32) {
    %c0_i32 = arith.constant 0 : i32
    %c0_i32_0 = arith.constant 0 : i32
    %c0_i32_1 = arith.constant 0 : i32
    return %arg1, %c0_i32, %c0_i32_0 : i32, i32, i32
  }
  func.func @transform_6(%arg0: i32, %arg1: i32) -> (i32, i32, i32) {
    %c0_i32 = arith.constant 0 : i32
    %c0_i32_0 = arith.constant 0 : i32
    %c0_i32_1 = arith.constant 0 : i32
    return %arg1, %c0_i32, %c0_i32_0 : i32, i32, i32
  }
  func.func @transform_7(%arg0: i32, %arg1: i32) -> (i32, i32, i32) {
    %c0_i32 = arith.constant 0 : i32
    %c0_i32_0 = arith.constant 0 : i32
    %c0_i32_1 = arith.constant 0 : i32
    return %arg1, %c0_i32, %c0_i32_0 : i32, i32, i32
  }
  func.func @transform_8(%arg0: i32, %arg1: i32) -> (i32, i32, i32) {
    %c0_i32 = arith.constant 0 : i32
    %c0_i32_0 = arith.constant 0 : i32
    %c0_i32_1 = arith.constant 0 : i32
    return %arg1, %c0_i32, %c0_i32_0 : i32, i32, i32
  }
  func.func @transform_9(%arg0: i32, %arg1: i32) -> (i32, i32, i32) {
    %c0_i32 = arith.constant 0 : i32
    %c0_i32_0 = arith.constant 0 : i32
    %c0_i32_1 = arith.constant 0 : i32
    return %arg1, %c0_i32, %c0_i32_0 : i32, i32, i32
  }
  func.func @transform_10(%arg0: i32, %arg1: i32) -> (i32, i32, i32) {
    %c0_i32 = arith.constant 0 : i32
    %c0_i32_0 = arith.constant 0 : i32
    %c0_i32_1 = arith.constant 0 : i32
    return %arg1, %c0_i32, %c0_i32_0 : i32, i32, i32
  }
  func.func @transform_11(%arg0: i32, %arg1: i32) -> (i32, i32, i32) {
    %c0_i32 = arith.constant 0 : i32
    %c0_i32_0 = arith.constant 0 : i32
    %c0_i32_1 = arith.constant 0 : i32
    return %arg1, %c0_i32, %c0_i32_0 : i32, i32, i32
  }
  func.func @transform_12(%arg0: i32, %arg1: i32) -> (i32, i32, i32) {
    %c0_i32 = arith.constant 0 : i32
    %c0_i32_0 = arith.constant 0 : i32
    %c0_i32_1 = arith.constant 0 : i32
    return %arg1, %c0_i32, %c0_i32_0 : i32, i32, i32
  }
  func.func @transform_13(%arg0: i32, %arg1: i32) -> (i32, i32, i32) {
    %c0_i32 = arith.constant 0 : i32
    %c0_i32_0 = arith.constant 0 : i32
    %c0_i32_1 = arith.constant 0 : i32
    return %arg0, %c0_i32, %c0_i32_0 : i32, i32, i32
  }
}

</mosaic_0001>

<llo_original>
// kernel: gpt_forward.1
$region0: #{gpt_forward.1}
  #allocation0 [shape = 'u32[]', space=smem, size = 0x4, offset = 0x4, fixed_abs, tag = 'smem constant byte address 0x4 - core index']
  #allocation1 [shape = 'u32[72,128]{1,0:T(1,128)}', space=vmem, size = 0x9000, scoped, tag = 'internal scratch']
  #allocation2 [shape = 'f32[8,32]{1,0:T(8,128)}', space=vmem, size = 0x1000, scoped, tag = 'scratch operand']
  %s0 = inlined_call_operand.vmem [shape: f32[2,8,32], index: 0, kind: input, shape index: {}]
  %s1 = inlined_call_operand.vmem [shape: f32[2,1,32], index: 1, kind: input, shape index: {}]
  %s2 = inlined_call_operand.vmem [shape: f32[2,1,32], index: 2, kind: input, shape index: {}]
  %s3 = inlined_call_operand.vmem [shape: bf16[2,32,96], index: 3, kind: input, shape index: {}]
  %s4 = inlined_call_operand.vmem [shape: f32[2,1,96], index: 4, kind: input, shape index: {}]
  %s5 = inlined_call_operand.vmem [shape: bf16[2,32,32], index: 5, kind: input, shape index: {}]
  %s6 = inlined_call_operand.vmem [shape: f32[2,1,32], index: 6, kind: input, shape index: {}]
  %s7 = inlined_call_operand.vmem [shape: f32[2,1,32], index: 7, kind: input, shape index: {}]
  %s8 = inlined_call_operand.vmem [shape: f32[2,1,32], index: 8, kind: input, shape index: {}]
  %s9 = inlined_call_operand.vmem [shape: bf16[2,32,128], index: 9, kind: input, shape index: {}]
  %s10 = inlined_call_operand.vmem [shape: f32[2,1,128], index: 10, kind: input, shape index: {}]
  %s11 = inlined_call_operand.vmem [shape: bf16[2,128,32], index: 11, kind: input, shape index: {}]
  %s12 = inlined_call_operand.vmem [shape: f32[2,1,32], index: 12, kind: input, shape index: {}]
  %s13 = inlined_call_operand.vmem [shape: f32[2,8,32], index: 13, kind: output, shape index: {}]
  %s14 = sld [smem:[#allocation0]]
  $region93: #{gpt_forward.1} parent=0
    _
  %s16 = ssub.s32 1, %s14
  %s17 = scalar_select 0, %s16, %s14
  loop: start=0, step=1, limit=6
  $region2: #{gpt_forward.1} parent=0 // loop_pre_header
    _
  $region3: #{gpt_forward.1} parent=0 // loop_header
    %s19 = sphi 0, %s23
    %p20 = scmp.ge.s32.totalorder %s19, 6
    %s26 = sphi 0, %s38
    %s27 = sphi 0, %s34
    %s28 = sphi 0, %s26
    %s29 = sphi 0, %s27
    %s30 = sphi 0, %s28
    %s31 = sphi 0, %s29
    %s41 = sphi 0, %s43
    %s44 = sphi 0, %s41
    %s45 = sphi 0, %s44
    %s61 = sphi 0, %s45
    %s67 = sphi 0, %s69
    %s70 = sphi 0, %s67
    %s71 = sphi 0, %s70
    %s87 = sphi 0, %s71
    %s93 = sphi 0, %s95
    %s96 = sphi 0, %s93
    %s97 = sphi 0, %s96
    %s113 = sphi 0, %s97
    %s119 = sphi 0, %s121
    %s122 = sphi 0, %s119
    %s123 = sphi 0, %s122
    %s139 = sphi 0, %s123
    %s145 = sphi 0, %s147
    %s148 = sphi 0, %s145
    %s149 = sphi 0, %s148
    %s165 = sphi 0, %s149
    %s171 = sphi 0, %s173
    %s174 = sphi 0, %s171
    %s175 = sphi 0, %s174
    %s191 = sphi 0, %s175
    %s197 = sphi 0, %s199
    %s200 = sphi 0, %s197
    %s201 = sphi 0, %s200
    %s217 = sphi 0, %s201
    %s223 = sphi 0, %s225
    %s226 = sphi 0, %s223
    %s227 = sphi 0, %s226
    %s243 = sphi 0, %s227
    %s249 = sphi 0, %s251
    %s252 = sphi 0, %s249
    %s253 = sphi 0, %s252
    %s269 = sphi 0, %s253
    %s275 = sphi 0, %s277
    %s278 = sphi 0, %s275
    %s279 = sphi 0, %s278
    %s295 = sphi 0, %s279
    %s301 = sphi 0, %s303
    %s304 = sphi 0, %s301
    %s305 = sphi 0, %s304
    %s321 = sphi 0, %s305
    %s327 = sphi 0, %s329
    %s330 = sphi 0, %s327
    %s331 = sphi 0, %s330
    %s347 = sphi 0, %s331
    %s353 = sphi 0, %s355
    %s356 = sphi 0, %s353
    %s357 = sphi 0, %s356
    %s373 = sphi 0, %s357
    %s379 = sphi 0, %s381
    %s382 = sphi 0, %s379
    %s383 = sphi 0, %s382
    %s399 = sphi 0, %s383
  $region4: #{gpt_forward.1} parent=0 // loop_header_branch
    %22 = sbr.rel (%p20) target = $region8
  $region5: #{gpt_forward.1} parent=0 // loop_body
    %s24 = ssub.s32 %s19, 1
    %s25 = ssub.s32 %s19, 2
    %s32 = sadd.s32 1, %s27
    %p33 = scmp.ge.s32.totalorder %s32, 2
    %s34 = scalar_select %p33, 0, %s32
    %s35 = sadd.s32 1, %s26
    %s36 = scalar_select %p33, %s35, %s26
    %p37 = scmp.ge.s32.totalorder %s36, 2
    %s38 = scalar_select %p37, 0, %s36
    %s39 = ssub.s32 %s26, %s38
    %p40 = scmp.eq.s32.totalorder %s39, 0
    %s42 = sadd.s32 %s41, 1
    %s43 = scalar_select %p40, %s41, %s42
    %p46 = pneg %p40
    %p47 = scmp.eq.s32.totalorder %s19, 3
    %p48 = por %p46, %p47
    %p49 = scmp.ne.s32.totalorder %s41, %s44
    %p50 = scmp.eq.s32.totalorder %s19, 0
    %p51 = por %p49, %p50
    %p52 = scmp.ne.s32.totalorder %s41, %s44
    %p53 = scmp.eq.s32.totalorder %s24, 3
    %p54 = por %p52, %p53
    %p55 = scmp.ne.s32.totalorder %s44, %s45
    %p56 = scmp.eq.s32.totalorder %s24, 0
    %p57 = por %p55, %p56
    %p58 = scmp.ne.s32.totalorder %s44, %s45
    %p59 = scmp.eq.s32.totalorder %s25, 3
    %p60 = por %p58, %p59
    %p62 = scmp.ne.s32.totalorder %s45, %s61
    %p63 = scmp.eq.s32.totalorder %s25, 0
    %p64 = por %p62, %p63
    %s65 = ssub.s32 %s27, %s34
    %p66 = scmp.eq.s32.totalorder %s65, 0
    %s68 = sadd.s32 %s67, 1
    %s69 = scalar_select %p66, %s67, %s68
    %p72 = pneg %p66
    %p73 = scmp.eq.s32.totalorder %s19, 3
    %p74 = por %p72, %p73
    %p75 = scmp.ne.s32.totalorder %s67, %s70
    %p76 = scmp.eq.s32.totalorder %s19, 0
    %p77 = por %p75, %p76
    %p78 = scmp.ne.s32.totalorder %s67, %s70
    %p79 = scmp.eq.s32.totalorder %s24, 3
    %p80 = por %p78, %p79
    %p81 = scmp.ne.s32.totalorder %s70, %s71
    %p82 = scmp.eq.s32.totalorder %s24, 0
    %p83 = por %p81, %p82
    %p84 = scmp.ne.s32.totalorder %s70, %s71
    %p85 = scmp.eq.s32.totalorder %s25, 3
    %p86 = por %p84, %p85
    %p88 = scmp.ne.s32.totalorder %s71, %s87
    %p89 = scmp.eq.s32.totalorder %s25, 0
    %p90 = por %p88, %p89
    %s91 = ssub.s32 %s27, %s34
    %p92 = scmp.eq.s32.totalorder %s91, 0
    %s94 = sadd.s32 %s93, 1
    %s95 = scalar_select %p92, %s93, %s94
    %p98 = pneg %p92
    %p99 = scmp.eq.s32.totalorder %s19, 3
    %p100 = por %p98, %p99
    %p101 = scmp.ne.s32.totalorder %s93, %s96
    %p102 = scmp.eq.s32.totalorder %s19, 0
    %p103 = por %p101, %p102
    %p104 = scmp.ne.s32.totalorder %s93, %s96
    %p105 = scmp.eq.s32.totalorder %s24, 3
    %p106 = por %p104, %p105
    %p107 = scmp.ne.s32.totalorder %s96, %s97
    %p108 = scmp.eq.s32.totalorder %s24, 0
    %p109 = por %p107, %p108
    %p110 = scmp.ne.s32.totalorder %s96, %s97
    %p111 = scmp.eq.s32.totalorder %s25, 3
    %p112 = por %p110, %p111
    %p114 = scmp.ne.s32.totalorder %s97, %s113
    %p115 = scmp.eq.s32.totalorder %s25, 0
    %p116 = por %p114, %p115
    %s117 = ssub.s32 %s27, %s34
    %p118 = scmp.eq.s32.totalorder %s117, 0
    %s120 = sadd.s32 %s119, 1
    %s121 = scalar_select %p118, %s119, %s120
    %p124 = pneg %p118
    %p125 = scmp.eq.s32.totalorder %s19, 3
    %p126 = por %p124, %p125
    %p127 = scmp.ne.s32.totalorder %s119, %s122
    %p128 = scmp.eq.s32.totalorder %s19, 0
    %p129 = por %p127, %p128
    %p130 = scmp.ne.s32.totalorder %s119, %s122
    %p131 = scmp.eq.s32.totalorder %s24, 3
    %p132 = por %p130, %p131
    %p133 = scmp.ne.s32.totalorder %s122, %s123
    %p134 = scmp.eq.s32.totalorder %s24, 0
    %p135 = por %p133, %p134
    %p136 = scmp.ne.s32.totalorder %s122, %s123
    %p137 = scmp.eq.s32.totalorder %s25, 3
    %p138 = por %p136, %p137
    %p140 = scmp.ne.s32.totalorder %s123, %s139
    %p141 = scmp.eq.s32.totalorder %s25, 0
    %p142 = por %p140, %p141
    %s143 = ssub.s32 %s27, %s34
    %p144 = scmp.eq.s32.totalorder %s143, 0
    %s146 = sadd.s32 %s145, 1
    %s147 = scalar_select %p144, %s145, %s146
    %p150 = pneg %p144
    %p151 = scmp.eq.s32.totalorder %s19, 3
    %p152 = por %p150, %p151
    %p153 = scmp.ne.s32.totalorder %s145, %s148
    %p154 = scmp.eq.s32.totalorder %s19, 0
    %p155 = por %p153, %p154
    %p156 = scmp.ne.s32.totalorder %s145, %s148
    %p157 = scmp.eq.s32.totalorder %s24, 3
    %p158 = por %p156, %p157
    %p159 = scmp.ne.s32.totalorder %s148, %s149
    %p160 = scmp.eq.s32.totalorder %s24, 0
    %p161 = por %p159, %p160
    %p162 = scmp.ne.s32.totalorder %s148, %s149
    %p163 = scmp.eq.s32.totalorder %s25, 3
    %p164 = por %p162, %p163
    %p166 = scmp.ne.s32.totalorder %s149, %s165
    %p167 = scmp.eq.s32.totalorder %s25, 0
    %p168 = por %p166, %p167
    %s169 = ssub.s32 %s27, %s34
    %p170 = scmp.eq.s32.totalorder %s169, 0
    %s172 = sadd.s32 %s171, 1
    %s173 = scalar_select %p170, %s171, %s172
    %p176 = pneg %p170
    %p177 = scmp.eq.s32.totalorder %s19, 3
    %p178 = por %p176, %p177
    %p179 = scmp.ne.s32.totalorder %s171, %s174
    %p180 = scmp.eq.s32.totalorder %s19, 0
    %p181 = por %p179, %p180
    %p182 = scmp.ne.s32.totalorder %s171, %s174
    %p183 = scmp.eq.s32.totalorder %s24, 3
    %p184 = por %p182, %p183
    %p185 = scmp.ne.s32.totalorder %s174, %s175
    %p186 = scmp.eq.s32.totalorder %s24, 0
    %p187 = por %p185, %p186
    %p188 = scmp.ne.s32.totalorder %s174, %s175
    %p189 = scmp.eq.s32.totalorder %s25, 3
    %p190 = por %p188, %p189
    %p192 = scmp.ne.s32.totalorder %s175, %s191
    %p193 = scmp.eq.s32.totalorder %s25, 0
    %p194 = por %p192, %p193
    %s195 = ssub.s32 %s27, %s34
    %p196 = scmp.eq.s32.totalorder %s195, 0
    %s198 = sadd.s32 %s197, 1
    %s199 = scalar_select %p196, %s197, %s198
    %p202 = pneg %p196
    %p203 = scmp.eq.s32.totalorder %s19, 3
    %p204 = por %p202, %p203
    %p205 = scmp.ne.s32.totalorder %s197, %s200
    %p206 = scmp.eq.s32.totalorder %s19, 0
    %p207 = por %p205, %p206
    %p208 = scmp.ne.s32.totalorder %s197, %s200
    %p209 = scmp.eq.s32.totalorder %s24, 3
    %p210 = por %p208, %p209
    %p211 = scmp.ne.s32.totalorder %s200, %s201
    %p212 = scmp.eq.s32.totalorder %s24, 0
    %p213 = por %p211, %p212
    %p214 = scmp.ne.s32.totalorder %s200, %s201
    %p215 = scmp.eq.s32.totalorder %s25, 3
    %p216 = por %p214, %p215
    %p218 = scmp.ne.s32.totalorder %s201, %s217
    %p219 = scmp.eq.s32.totalorder %s25, 0
    %p220 = por %p218, %p219
    %s221 = ssub.s32 %s27, %s34
    %p222 = scmp.eq.s32.totalorder %s221, 0
    %s224 = sadd.s32 %s223, 1
    %s225 = scalar_select %p222, %s223, %s224
    %p228 = pneg %p222
    %p229 = scmp.eq.s32.totalorder %s19, 3
    %p230 = por %p228, %p229
    %p231 = scmp.ne.s32.totalorder %s223, %s226
    %p232 = scmp.eq.s32.totalorder %s19, 0
    %p233 = por %p231, %p232
    %p234 = scmp.ne.s32.totalorder %s223, %s226
    %p235 = scmp.eq.s32.totalorder %s24, 3
    %p236 = por %p234, %p235
    %p237 = scmp.ne.s32.totalorder %s226, %s227
    %p238 = scmp.eq.s32.totalorder %s24, 0
    %p239 = por %p237, %p238
    %p240 = scmp.ne.s32.totalorder %s226, %s227
    %p241 = scmp.eq.s32.totalorder %s25, 3
    %p242 = por %p240, %p241
    %p244 = scmp.ne.s32.totalorder %s227, %s243
    %p245 = scmp.eq.s32.totalorder %s25, 0
    %p246 = por %p244, %p245
    %s247 = ssub.s32 %s27, %s34
    %p248 = scmp.eq.s32.totalorder %s247, 0
    %s250 = sadd.s32 %s249, 1
    %s251 = scalar_select %p248, %s249, %s250
    %p254 = pneg %p248
    %p255 = scmp.eq.s32.totalorder %s19, 3
    %p256 = por %p254, %p255
    %p257 = scmp.ne.s32.totalorder %s249, %s252
    %p258 = scmp.eq.s32.totalorder %s19, 0
    %p259 = por %p257, %p258
    %p260 = scmp.ne.s32.totalorder %s249, %s252
    %p261 = scmp.eq.s32.totalorder %s24, 3
    %p262 = por %p260, %p261
    %p263 = scmp.ne.s32.totalorder %s252, %s253
    %p264 = scmp.eq.s32.totalorder %s24, 0
    %p265 = por %p263, %p264
    %p266 = scmp.ne.s32.totalorder %s252, %s253
    %p267 = scmp.eq.s32.totalorder %s25, 3
    %p268 = por %p266, %p267
    %p270 = scmp.ne.s32.totalorder %s253, %s269
    %p271 = scmp.eq.s32.totalorder %s25, 0
    %p272 = por %p270, %p271
    %s273 = ssub.s32 %s27, %s34
    %p274 = scmp.eq.s32.totalorder %s273, 0
    %s276 = sadd.s32 %s275, 1
    %s277 = scalar_select %p274, %s275, %s276
    %p280 = pneg %p274
    %p281 = scmp.eq.s32.totalorder %s19, 3
    %p282 = por %p280, %p281
    %p283 = scmp.ne.s32.totalorder %s275, %s278
    %p284 = scmp.eq.s32.totalorder %s19, 0
    %p285 = por %p283, %p284
    %p286 = scmp.ne.s32.totalorder %s275, %s278
    %p287 = scmp.eq.s32.totalorder %s24, 3
    %p288 = por %p286, %p287
    %p289 = scmp.ne.s32.totalorder %s278, %s279
    %p290 = scmp.eq.s32.totalorder %s24, 0
    %p291 = por %p289, %p290
    %p292 = scmp.ne.s32.totalorder %s278, %s279
    %p293 = scmp.eq.s32.totalorder %s25, 3
    %p294 = por %p292, %p293
    %p296 = scmp.ne.s32.totalorder %s279, %s295
    %p297 = scmp.eq.s32.totalorder %s25, 0
    %p298 = por %p296, %p297
    %s299 = ssub.s32 %s27, %s34
    %p300 = scmp.eq.s32.totalorder %s299, 0
    %s302 = sadd.s32 %s301, 1
    %s303 = scalar_select %p300, %s301, %s302
    %p306 = pneg %p300
    %p307 = scmp.eq.s32.totalorder %s19, 3
    %p308 = por %p306, %p307
    %p309 = scmp.ne.s32.totalorder %s301, %s304
    %p310 = scmp.eq.s32.totalorder %s19, 0
    %p311 = por %p309, %p310
    %p312 = scmp.ne.s32.totalorder %s301, %s304
    %p313 = scmp.eq.s32.totalorder %s24, 3
    %p314 = por %p312, %p313
    %p315 = scmp.ne.s32.totalorder %s304, %s305
    %p316 = scmp.eq.s32.totalorder %s24, 0
    %p317 = por %p315, %p316
    %p318 = scmp.ne.s32.totalorder %s304, %s305
    %p319 = scmp.eq.s32.totalorder %s25, 3
    %p320 = por %p318, %p319
    %p322 = scmp.ne.s32.totalorder %s305, %s321
    %p323 = scmp.eq.s32.totalorder %s25, 0
    %p324 = por %p322, %p323
    %s325 = ssub.s32 %s27, %s34
    %p326 = scmp.eq.s32.totalorder %s325, 0
    %s328 = sadd.s32 %s327, 1
    %s329 = scalar_select %p326, %s327, %s328
    %p332 = pneg %p326
    %p333 = scmp.eq.s32.totalorder %s19, 3
    %p334 = por %p332, %p333
    %p335 = scmp.ne.s32.totalorder %s327, %s330
    %p336 = scmp.eq.s32.totalorder %s19, 0
    %p337 = por %p335, %p336
    %p338 = scmp.ne.s32.totalorder %s327, %s330
    %p339 = scmp.eq.s32.totalorder %s24, 3
    %p340 = por %p338, %p339
    %p341 = scmp.ne.s32.totalorder %s330, %s331
    %p342 = scmp.eq.s32.totalorder %s24, 0
    %p343 = por %p341, %p342
    %p344 = scmp.ne.s32.totalorder %s330, %s331
    %p345 = scmp.eq.s32.totalorder %s25, 3
    %p346 = por %p344, %p345
    %p348 = scmp.ne.s32.totalorder %s331, %s347
    %p349 = scmp.eq.s32.totalorder %s25, 0
    %p350 = por %p348, %p349
    %s351 = ssub.s32 %s27, %s34
    %p352 = scmp.eq.s32.totalorder %s351, 0
    %s354 = sadd.s32 %s353, 1
    %s355 = scalar_select %p352, %s353, %s354
    %p358 = pneg %p352
    %p359 = scmp.eq.s32.totalorder %s19, 3
    %p360 = por %p358, %p359
    %p361 = scmp.ne.s32.totalorder %s353, %s356
    %p362 = scmp.eq.s32.totalorder %s19, 0
    %p363 = por %p361, %p362
    %p364 = scmp.ne.s32.totalorder %s353, %s356
    %p365 = scmp.eq.s32.totalorder %s24, 3
    %p366 = por %p364, %p365
    %p367 = scmp.ne.s32.totalorder %s356, %s357
    %p368 = scmp.eq.s32.totalorder %s24, 0
    %p369 = por %p367, %p368
    %p370 = scmp.ne.s32.totalorder %s356, %s357
    %p371 = scmp.eq.s32.totalorder %s25, 3
    %p372 = por %p370, %p371
    %p374 = scmp.ne.s32.totalorder %s357, %s373
    %p375 = scmp.eq.s32.totalorder %s25, 0
    %p376 = por %p374, %p375
    %s377 = ssub.s32 %s26, %s38
    %p378 = scmp.eq.s32.totalorder %s377, 0
    %s380 = sadd.s32 %s379, 1
    %s381 = scalar_select %p378, %s379, %s380
    %p384 = pneg %p378
    %p385 = scmp.eq.s32.totalorder %s19, 3
    %p386 = por %p384, %p385
    %p387 = scmp.ne.s32.totalorder %s379, %s382
    %p388 = scmp.eq.s32.totalorder %s19, 0
    %p389 = por %p387, %p388
    %p390 = scmp.ne.s32.totalorder %s379, %s382
    %p391 = scmp.eq.s32.totalorder %s24, 3
    %p392 = por %p390, %p391
    %p393 = scmp.ne.s32.totalorder %s382, %s383
    %p394 = scmp.eq.s32.totalorder %s24, 0
    %p395 = por %p393, %p394
    %p396 = scmp.ne.s32.totalorder %s382, %s383
    %p397 = scmp.eq.s32.totalorder %s25, 3
    %p398 = por %p396, %p397
    %p400 = scmp.ne.s32.totalorder %s383, %s399
    %p401 = scmp.eq.s32.totalorder %s25, 0
    %p402 = por %p400, %p401
    %p403 = scmp.le.s32.totalorder 1, %s19
    %p404 = scmp.lt.s32.totalorder %s19, 5
    %p405 = pnand %p403, %p404
    %p406 = pneg %p405
    // Predicated region
    $region9: #{gpt_forward.1} parent=5 // pred_check
      _
    $region10: #{gpt_forward.1} parent=5 // pred_check_branch
      %408 = sbr.rel (%p405) target = $region12
    $region11: #{gpt_forward.1} parent=5 // pred_region
      %s409 = ssub.s32 %s19, 1
    $region12: #{gpt_forward.1} parent=5 // pred_fallthru
      _
    %p410 = scmp.lt.s32.totalorder %s19, 4
    // Predicated region
    $region13: #{gpt_forward.1} parent=5 // pred_check
      %p411 = pneg %p410
    $region14: #{gpt_forward.1} parent=5 // pred_check_branch
      %413 = sbr.rel (%p411) target = $region16
    $region15: #{gpt_forward.1} parent=5 // pred_region
      // Predicated region
      $region17: #{gpt_forward.1} parent=15 // pred_check
        %p414 = pneg %p51
      $region18: #{gpt_forward.1} parent=15 // pred_check_branch
        %416 = sbr.rel (%p414) target = $region20
      $region19: #{gpt_forward.1} parent=15 // pred_region
        %p417 = scmp.lt.s32.totalorder %s26, 1
        %s418 = scalar_select %p417, %s26, 1
        %s419 = smul.addr %s418, 8
        %s420 = scalar_lea.vmem %s0, %s419
      $region20: #{gpt_forward.1} parent=15 // pred_fallthru
        _
      // Predicated region
      $region21: #{gpt_forward.1} parent=15 // pred_check
        %p421 = pneg %p77
      $region22: #{gpt_forward.1} parent=15 // pred_check_branch
        %423 = sbr.rel (%p421) target = $region24
      $region23: #{gpt_forward.1} parent=15 // pred_region
        %p424 = scmp.lt.s32.totalorder %s27, 1
        %s425 = scalar_select %p424, %s27, 1
        %s426 = scalar_lea.vmem %s1, %s425
      $region24: #{gpt_forward.1} parent=15 // pred_fallthru
        _
      // Predicated region
      $region25: #{gpt_forward.1} parent=15 // pred_check
        %p427 = pneg %p103
      $region26: #{gpt_forward.1} parent=15 // pred_check_branch
        %429 = sbr.rel (%p427) target = $region28
      $region27: #{gpt_forward.1} parent=15 // pred_region
        %p430 = scmp.lt.s32.totalorder %s27, 1
        %s431 = scalar_select %p430, %s27, 1
        %s432 = scalar_lea.vmem %s2, %s431
      $region28: #{gpt_forward.1} parent=15 // pred_fallthru
        _
      // Predicated region
      $region29: #{gpt_forward.1} parent=15 // pred_check
        %p433 = pneg %p129
      $region30: #{gpt_forward.1} parent=15 // pred_check_branch
        %435 = sbr.rel (%p433) target = $region32
      $region31: #{gpt_forward.1} parent=15 // pred_region
        %p436 = scmp.lt.s32.totalorder %s27, 1
        %s437 = scalar_select %p436, %s27, 1
        %s438 = smul.addr %s437, 4
        %s439 = smul.addr %s438, 4
        %s440 = scalar_lea.vmem %s3, %s439
      $region32: #{gpt_forward.1} parent=15 // pred_fallthru
        _
      // Predicated region
      $region33: #{gpt_forward.1} parent=15 // pred_check
        %p441 = pneg %p155
      $region34: #{gpt_forward.1} parent=15 // pred_check_branch
        %443 = sbr.rel (%p441) target = $region36
      $region35: #{gpt_forward.1} parent=15 // pred_region
        %p444 = scmp.lt.s32.totalorder %s27, 1
        %s445 = scalar_select %p444, %s27, 1
        %s446 = scalar_lea.vmem %s4, %s445
      $region36: #{gpt_forward.1} parent=15 // pred_fallthru
        _
      // Predicated region
      $region37: #{gpt_forward.1} parent=15 // pred_check
        %p447 = pneg %p181
      $region38: #{gpt_forward.1} parent=15 // pred_check_branch
        %449 = sbr.rel (%p447) target = $region40
      $region39: #{gpt_forward.1} parent=15 // pred_region
        %p450 = scmp.lt.s32.totalorder %s27, 1
        %s451 = scalar_select %p450, %s27, 1
        %s452 = smul.addr %s451, 4
        %s453 = smul.addr %s452, 4
        %s454 = scalar_lea.vmem %s5, %s453
      $region40: #{gpt_forward.1} parent=15 // pred_fallthru
        _
      // Predicated region
      $region41: #{gpt_forward.1} parent=15 // pred_check
        %p455 = pneg %p207
      $region42: #{gpt_forward.1} parent=15 // pred_check_branch
        %457 = sbr.rel (%p455) target = $region44
      $region43: #{gpt_forward.1} parent=15 // pred_region
        %p458 = scmp.lt.s32.totalorder %s27, 1
        %s459 = scalar_select %p458, %s27, 1
        %s460 = scalar_lea.vmem %s6, %s459
      $region44: #{gpt_forward.1} parent=15 // pred_fallthru
        _
      // Predicated region
      $region45: #{gpt_forward.1} parent=15 // pred_check
        %p461 = pneg %p233
      $region46: #{gpt_forward.1} parent=15 // pred_check_branch
        %463 = sbr.rel (%p461) target = $region48
      $region47: #{gpt_forward.1} parent=15 // pred_region
        %p464 = scmp.lt.s32.totalorder %s27, 1
        %s465 = scalar_select %p464, %s27, 1
        %s466 = scalar_lea.vmem %s7, %s465
      $region48: #{gpt_forward.1} parent=15 // pred_fallthru
        _
      // Predicated region
      $region49: #{gpt_forward.1} parent=15 // pred_check
        %p467 = pneg %p259
      $region50: #{gpt_forward.1} parent=15 // pred_check_branch
        %469 = sbr.rel (%p467) target = $region52
      $region51: #{gpt_forward.1} parent=15 // pred_region
        %p470 = scmp.lt.s32.totalorder %s27, 1
        %s471 = scalar_select %p470, %s27, 1
        %s472 = scalar_lea.vmem %s8, %s471
      $region52: #{gpt_forward.1} parent=15 // pred_fallthru
        _
      // Predicated region
      $region53: #{gpt_forward.1} parent=15 // pred_check
        %p473 = pneg %p285
      $region54: #{gpt_forward.1} parent=15 // pred_check_branch
        %475 = sbr.rel (%p473) target = $region56
      $region55: #{gpt_forward.1} parent=15 // pred_region
        %p476 = scmp.lt.s32.totalorder %s27, 1
        %s477 = scalar_select %p476, %s27, 1
        %s478 = smul.addr %s477, 4
        %s479 = smul.addr %s478, 4
        %s480 = scalar_lea.vmem %s9, %s479
      $region56: #{gpt_forward.1} parent=15 // pred_fallthru
        _
      // Predicated region
      $region57: #{gpt_forward.1} parent=15 // pred_check
        %p481 = pneg %p311
      $region58: #{gpt_forward.1} parent=15 // pred_check_branch
        %483 = sbr.rel (%p481) target = $region60
      $region59: #{gpt_forward.1} parent=15 // pred_region
        %p484 = scmp.lt.s32.totalorder %s27, 1
        %s485 = scalar_select %p484, %s27, 1
        %s486 = scalar_lea.vmem %s10, %s485
      $region60: #{gpt_forward.1} parent=15 // pred_fallthru
        _
      // Predicated region
      $region61: #{gpt_forward.1} parent=15 // pred_check
        %p487 = pneg %p337
      $region62: #{gpt_forward.1} parent=15 // pred_check_branch
        %489 = sbr.rel (%p487) target = $region64
      $region63: #{gpt_forward.1} parent=15 // pred_region
        %p490 = scmp.lt.s32.totalorder %s27, 1
        %s491 = scalar_select %p490, %s27, 1
        %s492 = smul.addr %s491, 16
        %s493 = smul.addr %s492, 4
        %s494 = scalar_lea.vmem %s11, %s493
      $region64: #{gpt_forward.1} parent=15 // pred_fallthru
        _
      // Predicated region
      $region65: #{gpt_forward.1} parent=15 // pred_check
        %p495 = pneg %p363
      $region66: #{gpt_forward.1} parent=15 // pred_check_branch
        %497 = sbr.rel (%p495) target = $region68
      $region67: #{gpt_forward.1} parent=15 // pred_region
        %p498 = scmp.lt.s32.totalorder %s27, 1
        %s499 = scalar_select %p498, %s27, 1
        %s500 = scalar_lea.vmem %s12, %s499
      $region68: #{gpt_forward.1} parent=15 // pred_fallthru
        _
    $region16: #{gpt_forward.1} parent=5 // pred_fallthru
      _
    %p501 = scmp.le.s32.totalorder 1, %s19
    %p502 = scmp.lt.s32.totalorder %s19, 5
    %p503 = pnand %p501, %p502
    %p504 = pneg %p503
    // Predicated region
    $region69: #{gpt_forward.1} parent=5 // pred_check
      _
    $region70: #{gpt_forward.1} parent=5 // pred_check_branch
      %506 = sbr.rel (%p503) target = $region72
    $region71: #{gpt_forward.1} parent=5 // pred_region
      %s507 = ssub.s32 %s19, 1
      %p508 = scmp.lt.s32.totalorder %s28, 1
      %s509 = scalar_select %p508, %s28, 1
      %s510 = smul.addr %s509, 8
      %s511 = scalar_lea.vmem %s0, %s510
      %p512 = pneg %p57
      %p513 = pneg %p54
      %p514 = scmp.lt.s32.totalorder %s29, 1
      %s515 = scalar_select %p514, %s29, 1
      %s516 = scalar_lea.vmem %s1, %s515
      %p517 = pneg %p83
      %p518 = pneg %p80
      %p519 = scmp.lt.s32.totalorder %s29, 1
      %s520 = scalar_select %p519, %s29, 1
      %s521 = scalar_lea.vmem %s2, %s520
      %p522 = pneg %p109
      %p523 = pneg %p106
      %p524 = scmp.lt.s32.totalorder %s29, 1
      %s525 = scalar_select %p524, %s29, 1
      %s526 = smul.addr %s525, 4
      %s527 = smul.addr %s526, 4
      %s528 = scalar_lea.vmem %s3, %s527
      %p529 = pneg %p135
      %p530 = pneg %p132
      %p531 = scmp.lt.s32.totalorder %s29, 1
      %s532 = scalar_select %p531, %s29, 1
      %s533 = scalar_lea.vmem %s4, %s532
      %p534 = pneg %p161
      %p535 = pneg %p158
      %p536 = scmp.lt.s32.totalorder %s29, 1
      %s537 = scalar_select %p536, %s29, 1
      %s538 = smul.addr %s537, 4
      %s539 = smul.addr %s538, 4
      %s540 = scalar_lea.vmem %s5, %s539
      %p541 = pneg %p187
      %p542 = pneg %p184
      %p543 = scmp.lt.s32.totalorder %s29, 1
      %s544 = scalar_select %p543, %s29, 1
      %s545 = scalar_lea.vmem %s6, %s544
      %p546 = pneg %p213
      %p547 = pneg %p210
      %p548 = scmp.lt.s32.totalorder %s29, 1
      %s549 = scalar_select %p548, %s29, 1
      %s550 = scalar_lea.vmem %s7, %s549
      %p551 = pneg %p239
      %p552 = pneg %p236
      %p553 = scmp.lt.s32.totalorder %s29, 1
      %s554 = scalar_select %p553, %s29, 1
      %s555 = scalar_lea.vmem %s8, %s554
      %p556 = pneg %p265
      %p557 = pneg %p262
      %p558 = scmp.lt.s32.totalorder %s29, 1
      %s559 = scalar_select %p558, %s29, 1
      %s560 = smul.addr %s559, 4
      %s561 = smul.addr %s560, 4
      %s562 = scalar_lea.vmem %s9, %s561
      %p563 = pneg %p291
      %p564 = pneg %p288
      %p565 = scmp.lt.s32.totalorder %s29, 1
      %s566 = scalar_select %p565, %s29, 1
      %s567 = scalar_lea.vmem %s10, %s566
      %p568 = pneg %p317
      %p569 = pneg %p314
      %p570 = scmp.lt.s32.totalorder %s29, 1
      %s571 = scalar_select %p570, %s29, 1
      %s572 = smul.addr %s571, 16
      %s573 = smul.addr %s572, 4
      %s574 = scalar_lea.vmem %s11, %s573
      %p575 = pneg %p343
      %p576 = pneg %p340
      %p577 = scmp.lt.s32.totalorder %s29, 1
      %s578 = scalar_select %p577, %s29, 1
      %s579 = scalar_lea.vmem %s12, %s578
      %p580 = pneg %p369
      %p581 = pneg %p366
      %p582 = pneg %p395
      %p583 = pneg %p392
      %p584 = scmp.lt.s32.totalorder %s28, 1
      %s585 = scalar_select %p584, %s28, 1
      %s586 = smul.addr %s585, 8
      %s587 = scalar_lea.vmem %s13, %s586
      %p588 = scmp.lt.s32.totalorder %s28, 1
      %s589 = scalar_select %p588, %s28, 1
      %s590 = smul.addr %s589, 8
      %s591 = scalar_lea.vmem %s0, %s590
      %p592 = scmp.lt.s32.totalorder %s29, 1
      %s593 = scalar_select %p592, %s29, 1
      %s594 = scalar_lea.vmem %s1, %s593
      %p595 = scmp.lt.s32.totalorder %s29, 1
      %s596 = scalar_select %p595, %s29, 1
      %s597 = scalar_lea.vmem %s2, %s596
      %p598 = scmp.lt.s32.totalorder %s29, 1
      %s599 = scalar_select %p598, %s29, 1
      %s600 = smul.addr %s599, 4
      %s601 = smul.addr %s600, 4
      %s602 = scalar_lea.vmem %s3, %s601
      %p603 = scmp.lt.s32.totalorder %s29, 1
      %s604 = scalar_select %p603, %s29, 1
      %s605 = scalar_lea.vmem %s4, %s604
      %p606 = scmp.lt.s32.totalorder %s29, 1
      %s607 = scalar_select %p606, %s29, 1
      %s608 = smul.addr %s607, 4
      %s609 = smul.addr %s608, 4
      %s610 = scalar_lea.vmem %s5, %s609
      %p611 = scmp.lt.s32.totalorder %s29, 1
      %s612 = scalar_select %p611, %s29, 1
      %s613 = scalar_lea.vmem %s6, %s612
      %p614 = scmp.lt.s32.totalorder %s29, 1
      %s615 = scalar_select %p614, %s29, 1
      %s616 = scalar_lea.vmem %s7, %s615
      %p617 = scmp.lt.s32.totalorder %s29, 1
      %s618 = scalar_select %p617, %s29, 1
      %s619 = scalar_lea.vmem %s8, %s618
      %p620 = scmp.lt.s32.totalorder %s29, 1
      %s621 = scalar_select %p620, %s29, 1
      %s622 = smul.addr %s621, 4
      %s623 = smul.addr %s622, 4
      %s624 = scalar_lea.vmem %s9, %s623
      %p625 = scmp.lt.s32.totalorder %s29, 1
      %s626 = scalar_select %p625, %s29, 1
      %s627 = scalar_lea.vmem %s10, %s626
      %p628 = scmp.lt.s32.totalorder %s29, 1
      %s629 = scalar_select %p628, %s29, 1
      %s630 = smul.addr %s629, 16
      %s631 = smul.addr %s630, 4
      %s632 = scalar_lea.vmem %s11, %s631
      %p633 = scmp.lt.s32.totalorder %s29, 1
      %s634 = scalar_select %p633, %s29, 1
      %s635 = scalar_lea.vmem %s12, %s634
      %p636 = scmp.lt.s32.totalorder %s28, 1
      %s637 = scalar_select %p636, %s28, 1
      %s638 = smul.addr %s637, 8
      %s639 = scalar_lea.vmem %s13, %s638
      %p641 = scmp.eq.s32.totalorder %s29, 0
      // Predicated region
      $region73: #{gpt_forward.1} parent=71 // pred_check
        %p642 = pneg %p641
      $region74: #{gpt_forward.1} parent=71 // pred_check_branch
        %644 = sbr.rel (%p642) target = $region76
      $region75: #{gpt_forward.1} parent=71 // pred_region
        %v645 = vld [vmem:[%s591] sm:$0xff]
        %vm646 = vcmask 261120
        %647 = vst.msk [vmem:[#allocation2] sm:$0xff] %vm646, %v645
      $region76: #{gpt_forward.1} parent=71 // pred_fallthru
        _
      %v648 = vld [vmem:[#allocation2] sm:$0xff]
      %v649 = vld [vmem:[%s594] sm:$0x1]
      %v650 = vld [vmem:[%s597] sm:$0x1]
      %vm651 = vcmask 261120
      %v652 = vsel %vm651, %v648, 0.0
      %653 = vadd.xlane.f32.xlu0 %v652
      %v654 = vpop.xlane.xlu0 %653
      %v655 = vrcp.pop 32.0
      %v656 = vmul.f32 32.0, %v655
      %v657 = vsub.f32 1.0, %v656
      %v658 = vmul.f32 %v655, %v657
      %v659 = vadd.f32 %v655, %v658
      %vm660 = vweird.f32 %v655
      %v661 = vsel %vm660, %v655, %v659
      %v662 = vmul.f32 %v654, %v661
      %v663 = vsub.f32 %v648, %v662
      %v664 = vmul.f32 %v663, %v663
      %v665 = vsel %vm651, %v664, 0.0
      %666 = vadd.xlane.f32.xlu0 %v665
      %v667 = vpop.xlane.xlu0 %666
      %v668 = vmul.f32 %v667, %v661
      %v669 = vadd.f32 %v668, 1e-05
      %v670 = vrsqrt.pop %v669
      %v671 = vmul.f32 %v670, %v669
      %v672 = vmul.f32 %v671, %v670
      %v673 = vmul.f32 0.5, %v672
      %v674 = vsub.f32 1.5, %v673
      %v675 = vmul.f32 %v670, %v674
      %v676 = vmul.f32 %v669, %v675
      %vm677 = vcmp.eq.f32.partialorder %v669, inf
      %v678 = vsel %vm677, %v669, %v676
      %vm679 = vcmp.eq.f32.partialorder %v669, 0.0
      %v680 = vand.u32 %v669, 2147483648
      %v681 = vsel %vm679, %v680, %v678
      %v682 = vrcp.pop %v681
      %v683 = vmul.f32 %v681, %v682
      %v684 = vsub.f32 1.0, %v683
      %v685 = vmul.f32 %v682, %v684
      %v686 = vadd.f32 %v682, %v685
      %vm687 = vweird.f32 %v681
      %vm688 = vweird.f32 %v682
      %vm689 = vmor %vm687, %vm688
      %v690 = vsel %vm689, %v682, %v686
      %v691 = vand.u32 2147483647, %v681
      %vm692 = vcmp.eq.f32.partialorder %v691, 8.507059e+37
      %v693 = vand.u32 %v681, 2147483648
      %v694 = vor.u32 1.1754944e-38, %v693
      %v695 = vsel %vm692, %v694, %v690
      %v696 = vmul.f32 %v663, %v695
      %v698 = vperm.slane %v649, 0
      %v700 = vmul.f32 %v696, %v698
      %v702 = vperm.slane %v650, 0
      %v704 = vadd.f32 %v700, %v702
      %v705 = vpack.c.bf16 %v704, %v704
      %v706 = vld [vmem:[%s602] sm:$0xf]
      %v707 = vld [vmem:[%s602 + $0x4] sm:$0xf]
      %v708 = vld [vmem:[%s602 + $0x8] sm:$0xf]
      %v709 = vld [vmem:[%s602 + $0xc] sm:$0xf]
      %v710 = vld [vmem:[%s605] sm:$0x1]
      %v712 = vperm.slane %v710, 0
      %v718 = vunpack.c.l.b16 %v706
      %v719 = vunpack.c.l.b16 %v707
      %v720 = vunpack.c.l.b16 %v708
      %v721 = vunpack.c.l.b16 %v709
      %v722 = vpack.c.b16 %v719, %v718
      %v723 = vpack.c.b16 %v721, %v720
      %v727 = vsel %vm651, %v705, 0
      %729 = vmatpush.bf16.msra.mxu0 0
      %730 = vmatpush.bf16.msra.mxu0 0
      %731 = vmatpush.bf16.msra.mxu0 0
      %732 = vmatpush.bf16.msra.mxu0 0
      %733 = vmatpush.bf16.msra.mxu0 0
      %734 = vmatpush.bf16.msra.mxu0 0
      %735 = vmatpush.bf16.msra.mxu0 %v723
      %736 = vmatpush.bf16.msra.mxu0 %v722
      %737 = vmatmul.bf16.gmra.mxu0 %v727
      %v738 = vpop.f32.mrf.mxu0
      %v739 = vadd.f32 %v712, %v738
      %v740 = vpop.f32.mrf.mxu0
      %741 = vdwg.mxu0
      %743 = vrot.lane.b32.xlu0 %v739, 120
      %v744 = vpop.permute.xlu0 %743
      %746 = vrot.lane.b32.xlu0 %v739, 112
      %v747 = vpop.permute.xlu0 %746
      %749 = vrot.lane.b32.xlu0 %v739, 104
      %v750 = vpop.permute.xlu0 %749
      %v752 = vpack.c.bf16 %v739, %v739
      %v753 = vpack.c.bf16 %v744, %v744
      %v754 = vpack.c.bf16 %v747, %v747
      %v755 = vpack.c.bf16 %v750, %v750
      %v757 = vunpack.c.l.b16 %v752
      %v758 = vpack.c.b16 %v757, %v757
      %759 = vrot.lane.b32.xlu0 %v758, 96
      %v760 = vpop.permute.xlu0 %759
      %vm761 = vcmask 64512
      %v763 = vsel %vm761, %v752, 0
      %v766 = vsel %vm761, %v760, 0
      %768 = vmatpush.bf16.xpose.msra.mxu0 0
      %769 = vmatpush.bf16.xpose.msra.mxu0 0
      %770 = vmatpush.bf16.xpose.msra.mxu0 0
      %771 = vmatpush.bf16.xpose.msra.mxu0 0
      %772 = vmatpush.bf16.xpose.msra.mxu0 0
      %773 = vmatpush.bf16.xpose.msra.mxu0 0
      %774 = vmatpush.bf16.xpose.msra.mxu0 0
      %775 = vmatpush.bf16.xpose.msra.mxu0 %v766
      %776 = vmatmul.bf16.gmra.mxu0 %v763
      %v777 = vpop.f32.mrf.mxu0
      %v778 = vadd.f32 0.0, %v777
      %v779 = vpop.f32.mrf.mxu0
      %780 = vdwg.mxu0
      %v782 = vunpack.c.l.b16 %v753
      %v783 = vpack.c.b16 %v782, %v782
      %784 = vrot.lane.b32.xlu0 %v783, 96
      %v785 = vpop.permute.xlu0 %784
      %v787 = vsel %vm761, %v753, 0
      %v790 = vsel %vm761, %v785, 0
      %792 = vmatpush.bf16.xpose.msra.mxu0 0
      %793 = vmatpush.bf16.xpose.msra.mxu0 0
      %794 = vmatpush.bf16.xpose.msra.mxu0 0
      %795 = vmatpush.bf16.xpose.msra.mxu0 0
      %796 = vmatpush.bf16.xpose.msra.mxu0 0
      %797 = vmatpush.bf16.xpose.msra.mxu0 0
      %798 = vmatpush.bf16.xpose.msra.mxu0 0
      %799 = vmatpush.bf16.xpose.msra.mxu0 %v790
      %800 = vmatmul.bf16.gmra.mxu0 %v787
      %v801 = vpop.f32.mrf.mxu0
      %v802 = vadd.f32 0.0, %v801
      %v803 = vpop.f32.mrf.mxu0
      %804 = vdwg.mxu0
      %v806 = vunpack.c.l.b16 %v754
      %v807 = vpack.c.b16 %v806, %v806
      %808 = vrot.lane.b32.xlu0 %v807, 96
      %v809 = vpop.permute.xlu0 %808
      %v811 = vsel %vm761, %v754, 0
      %v814 = vsel %vm761, %v809, 0
      %816 = vmatpush.bf16.xpose.msra.mxu0 0
      %817 = vmatpush.bf16.xpose.msra.mxu0 0
      %818 = vmatpush.bf16.xpose.msra.mxu0 0
      %819 = vmatpush.bf16.xpose.msra.mxu0 0
      %820 = vmatpush.bf16.xpose.msra.mxu0 0
      %821 = vmatpush.bf16.xpose.msra.mxu0 0
      %822 = vmatpush.bf16.xpose.msra.mxu0 0
      %823 = vmatpush.bf16.xpose.msra.mxu0 %v814
      %824 = vmatmul.bf16.gmra.mxu0 %v811
      %v825 = vpop.f32.mrf.mxu0
      %v826 = vadd.f32 0.0, %v825
      %v827 = vpop.f32.mrf.mxu0
      %828 = vdwg.mxu0
      %v830 = vunpack.c.l.b16 %v755
      %v831 = vpack.c.b16 %v830, %v830
      %832 = vrot.lane.b32.xlu0 %v831, 96
      %v833 = vpop.permute.xlu0 %832
      %v835 = vsel %vm761, %v755, 0
      %v838 = vsel %vm761, %v833, 0
      %840 = vmatpush.bf16.xpose.msra.mxu0 0
      %841 = vmatpush.bf16.xpose.msra.mxu0 0
      %842 = vmatpush.bf16.xpose.msra.mxu0 0
      %843 = vmatpush.bf16.xpose.msra.mxu0 0
      %844 = vmatpush.bf16.xpose.msra.mxu0 0
      %845 = vmatpush.bf16.xpose.msra.mxu0 0
      %846 = vmatpush.bf16.xpose.msra.mxu0 0
      %847 = vmatpush.bf16.xpose.msra.mxu0 %v838
      %848 = vmatmul.bf16.gmra.mxu0 %v835
      %v849 = vpop.f32.mrf.mxu0
      %v850 = vadd.f32 0.0, %v849
      %v851 = vpop.f32.mrf.mxu0
      %852 = vdwg.mxu0
      %v853 = vmul.f32 %v778, 0.35355338
      %v854 = vmul.f32 %v802, 0.35355338
      %v855 = vmul.f32 %v826, 0.35355338
      %v856 = vmul.f32 %v850, 0.35355338
      %v857 = vlaneseq
      %v858 = vshrl.u32 %v857, 7
      %v859 = vlaneseq
      %v860 = vand.u32 %v859, 127
      %vm861 = vcmp.ge.s32.totalorder %v858, %v860
      %v862 = vsel %vm861, 1, 0
      %vm863 = vcmp.eq.s32.totalorder %v862, 1
      %v864 = vsel %vm863, %v853, -1e+30
      %v865 = vsel %vm863, %v854, -1e+30
      %v866 = vsel %vm863, %v855, -1e+30
      %v867 = vsel %vm863, %v856, -1e+30
      %v868 = vsel %vm761, %v864, -inf
      %869 = vmax.xlane.f32.xlu0 %v868
      %v870 = vpop.xlane.xlu0 %869
      %v871 = vsel %vm761, %v865, -inf
      %872 = vmax.xlane.f32.xlu0 %v871
      %v873 = vpop.xlane.xlu0 %872
      %v874 = vsel %vm761, %v866, -inf
      %875 = vmax.xlane.f32.xlu0 %v874
      %v876 = vpop.xlane.xlu0 %875
      %v877 = vsel %vm761, %v867, -inf
      %878 = vmax.xlane.f32.xlu0 %v877
      %v879 = vpop.xlane.xlu0 %878
      %v880 = vsub.f32 %v864, %v870
      %v881 = vsub.f32 %v865, %v873
      %v882 = vsub.f32 %v866, %v876
      %v883 = vsub.f32 %v867, %v879
      %v884 = vmul.f32 %v880, 1.442695
      %v885 = vpow.pop %v884
      %v886 = vmul.f32 %v881, 1.442695
      %v887 = vpow.pop %v886
      %v888 = vmul.f32 %v882, 1.442695
      %v889 = vpow.pop %v888
      %v890 = vmul.f32 %v883, 1.442695
      %v891 = vpow.pop %v890
      %v892 = vsel %vm761, %v885, 0.0
      %893 = vadd.xlane.f32.xlu0 %v892
      %v894 = vpop.xlane.xlu0 %893
      %v895 = vsel %vm761, %v887, 0.0
      %896 = vadd.xlane.f32.xlu0 %v895
      %v897 = vpop.xlane.xlu0 %896
      %v898 = vsel %vm761, %v889, 0.0
      %899 = vadd.xlane.f32.xlu0 %v898
      %v900 = vpop.xlane.xlu0 %899
      %v901 = vsel %vm761, %v891, 0.0
      %902 = vadd.xlane.f32.xlu0 %v901
      %v903 = vpop.xlane.xlu0 %902
      %v904 = vrcp.pop %v894
      %v905 = vrcp.pop %v897
      %v906 = vrcp.pop %v900
      %v907 = vrcp.pop %v903
      %v908 = vmul.f32 %v885, %v904
      %v909 = vmul.f32 %v887, %v905
      %v910 = vmul.f32 %v889, %v906
      %v911 = vmul.f32 %v891, %v907
      %v912 = vpack.c.bf16 %v908, %v908
      %v913 = vpack.c.bf16 %v909, %v909
      %v914 = vpack.c.bf16 %v910, %v910
      %v915 = vpack.c.bf16 %v911, %v911
      %916 = vrot.lane.b32.xlu0 %v758, 64
      %v917 = vpop.permute.xlu0 %916
      %v919 = vsel %vm761, %v912, 0
      %vm921 = vcmask 1043456
      %v923 = vsel %vm921, %v917, 0
      %925 = vmatpush.bf16.msra.mxu0 0
      %926 = vmatpush.bf16.msra.mxu0 0
      %927 = vmatpush.bf16.msra.mxu0 0
      %928 = vmatpush.bf16.msra.mxu0 0
      %929 = vmatpush.bf16.msra.mxu0 0
      %930 = vmatpush.bf16.msra.mxu0 0
      %931 = vmatpush.bf16.msra.mxu0 0
      %932 = vmatpush.bf16.msra.mxu0 %v923
      %933 = vmatmul.bf16.gmra.mxu0 %v919
      %v934 = vpop.f32.mrf.mxu0
      %v935 = vadd.f32 0.0, %v934
      %v936 = vpop.f32.mrf.mxu0
      %937 = vdwg.mxu0
      %938 = vrot.lane.b32.xlu0 %v783, 64
      %v939 = vpop.permute.xlu0 %938
      %v941 = vsel %vm761, %v913, 0
      %v944 = vsel %vm921, %v939, 0
      %946 = vmatpush.bf16.msra.mxu0 0
      %947 = vmatpush.bf16.msra.mxu0 0
      %948 = vmatpush.bf16.msra.mxu0 0
      %949 = vmatpush.bf16.msra.mxu0 0
      %950 = vmatpush.bf16.msra.mxu0 0
      %951 = vmatpush.bf16.msra.mxu0 0
      %952 = vmatpush.bf16.msra.mxu0 0
      %953 = vmatpush.bf16.msra.mxu0 %v944
      %954 = vmatmul.bf16.gmra.mxu0 %v941
      %v955 = vpop.f32.mrf.mxu0
      %v956 = vadd.f32 0.0, %v955
      %v957 = vpop.f32.mrf.mxu0
      %958 = vdwg.mxu0
      %959 = vrot.lane.b32.xlu0 %v807, 64
      %v960 = vpop.permute.xlu0 %959
      %v962 = vsel %vm761, %v914, 0
      %v965 = vsel %vm921, %v960, 0
      %967 = vmatpush.bf16.msra.mxu0 0
      %968 = vmatpush.bf16.msra.mxu0 0
      %969 = vmatpush.bf16.msra.mxu0 0
      %970 = vmatpush.bf16.msra.mxu0 0
      %971 = vmatpush.bf16.msra.mxu0 0
      %972 = vmatpush.bf16.msra.mxu0 0
      %973 = vmatpush.bf16.msra.mxu0 0
      %974 = vmatpush.bf16.msra.mxu0 %v965
      %975 = vmatmul.bf16.gmra.mxu0 %v962
      %v976 = vpop.f32.mrf.mxu0
      %v977 = vadd.f32 0.0, %v976
      %v978 = vpop.f32.mrf.mxu0
      %979 = vdwg.mxu0
      %980 = vrot.lane.b32.xlu0 %v831, 64
      %v981 = vpop.permute.xlu0 %980
      %v983 = vsel %vm761, %v915, 0
      %v986 = vsel %vm921, %v981, 0
      %988 = vmatpush.bf16.msra.mxu0 0
      %989 = vmatpush.bf16.msra.mxu0 0
      %990 = vmatpush.bf16.msra.mxu0 0
      %991 = vmatpush.bf16.msra.mxu0 0
      %992 = vmatpush.bf16.msra.mxu0 0
      %993 = vmatpush.bf16.msra.mxu0 0
      %994 = vmatpush.bf16.msra.mxu0 0
      %995 = vmatpush.bf16.msra.mxu0 %v986
      %996 = vmatmul.bf16.gmra.mxu0 %v983
      %v997 = vpop.f32.mrf.mxu0
      %v998 = vadd.f32 0.0, %v997
      %v999 = vpop.f32.mrf.mxu0
      %1000 = vdwg.mxu0
      %1002 = vrot.lane.b32.xlu0 %v956, 8
      %v1003 = vpop.permute.xlu0 %1002
      %1006 = vrot.lane.b32.xlu0 %v977, 16
      %v1007 = vpop.permute.xlu0 %1006
      %1010 = vrot.lane.b32.xlu0 %v998, 24
      %v1011 = vpop.permute.xlu0 %1010
      %v1013 = vsel %vm761, %v935, %v1003
      %vm1014 = vcmask 130048
      %v1015 = vsel %vm1014, %v1013, %v1007
      %vm1016 = vcmask 195584
      %v1017 = vsel %vm1016, %v1015, %v1011
      %v1018 = vpack.c.bf16 %v1017, %v1017
      %v1019 = vld [vmem:[%s610] sm:$0xf]
      %v1020 = vld [vmem:[%s610 + $0x4] sm:$0xf]
      %v1021 = vld [vmem:[%s610 + $0x8] sm:$0xf]
      %v1022 = vld [vmem:[%s610 + $0xc] sm:$0xf]
      %v1023 = vld [vmem:[%s613] sm:$0x1]
      %v1025 = vperm.slane %v1023, 0
      %v1031 = vunpack.c.l.b16 %v1019
      %v1032 = vunpack.c.l.b16 %v1020
      %v1033 = vunpack.c.l.b16 %v1021
      %v1034 = vunpack.c.l.b16 %v1022
      %v1035 = vpack.c.b16 %v1032, %v1031
      %v1036 = vpack.c.b16 %v1034, %v1033
      %v1040 = vsel %vm651, %v1018, 0
      %1042 = vmatpush.bf16.msra.mxu0 0
      %1043 = vmatpush.bf16.msra.mxu0 0
      %1044 = vmatpush.bf16.msra.mxu0 0
      %1045 = vmatpush.bf16.msra.mxu0 0
      %1046 = vmatpush.bf16.msra.mxu0 0
      %1047 = vmatpush.bf16.msra.mxu0 0
      %1048 = vmatpush.bf16.msra.mxu0 %v1036
      %1049 = vmatpush.bf16.msra.mxu0 %v1035
      %1050 = vmatmul.bf16.gmra.mxu0 %v1040
      %v1051 = vpop.f32.mrf.mxu0
      %v1052 = vadd.f32 %v1025, %v1051
      %v1053 = vpop.f32.mrf.mxu0
      %1054 = vdwg.mxu0
      %v1055 = vadd.f32 %v648, %v1052
      %v1056 = vld [vmem:[%s616] sm:$0x1]
      %v1057 = vld [vmem:[%s619] sm:$0x1]
      %v1058 = vsel %vm651, %v1055, 0.0
      %1059 = vadd.xlane.f32.xlu0 %v1058
      %v1060 = vpop.xlane.xlu0 %1059
      %v1061 = vmul.f32 %v1060, %v661
      %v1062 = vsub.f32 %v1055, %v1061
      %v1063 = vmul.f32 %v1062, %v1062
      %v1064 = vsel %vm651, %v1063, 0.0
      %1065 = vadd.xlane.f32.xlu0 %v1064
      %v1066 = vpop.xlane.xlu0 %1065
      %v1067 = vmul.f32 %v1066, %v661
      %v1068 = vadd.f32 %v1067, 1e-05
      %v1069 = vrsqrt.pop %v1068
      %v1070 = vmul.f32 %v1069, %v1068
      %v1071 = vmul.f32 %v1070, %v1069
      %v1072 = vmul.f32 0.5, %v1071
      %v1073 = vsub.f32 1.5, %v1072
      %v1074 = vmul.f32 %v1069, %v1073
      %v1075 = vmul.f32 %v1068, %v1074
      %vm1076 = vcmp.eq.f32.partialorder %v1068, inf
      %v1077 = vsel %vm1076, %v1068, %v1075
      %vm1078 = vcmp.eq.f32.partialorder %v1068, 0.0
      %v1079 = vand.u32 %v1068, 2147483648
      %v1080 = vsel %vm1078, %v1079, %v1077
      %v1081 = vrcp.pop %v1080
      %v1082 = vmul.f32 %v1080, %v1081
      %v1083 = vsub.f32 1.0, %v1082
      %v1084 = vmul.f32 %v1081, %v1083
      %v1085 = vadd.f32 %v1081, %v1084
      %vm1086 = vweird.f32 %v1080
      %vm1087 = vweird.f32 %v1081
      %vm1088 = vmor %vm1086, %vm1087
      %v1089 = vsel %vm1088, %v1081, %v1085
      %v1090 = vand.u32 2147483647, %v1080
      %vm1091 = vcmp.eq.f32.partialorder %v1090, 8.507059e+37
      %v1092 = vand.u32 %v1080, 2147483648
      %v1093 = vor.u32 1.1754944e-38, %v1092
      %v1094 = vsel %vm1091, %v1093, %v1089
      %v1095 = vmul.f32 %v1062, %v1094
      %v1097 = vperm.slane %v1056, 0
      %v1099 = vmul.f32 %v1095, %v1097
      %v1101 = vperm.slane %v1057, 0
      %v1103 = vadd.f32 %v1099, %v1101
      %v1104 = vpack.c.bf16 %v1103, %v1103
      %v1105 = vld [vmem:[%s624] sm:$0xf]
      %v1106 = vld [vmem:[%s624 + $0x4] sm:$0xf]
      %v1107 = vld [vmem:[%s624 + $0x8] sm:$0xf]
      %v1108 = vld [vmem:[%s624 + $0xc] sm:$0xf]
      %v1109 = vld [vmem:[%s627] sm:$0x1]
      %v1111 = vperm.slane %v1109, 0
      %v1117 = vunpack.c.l.b16 %v1105
      %v1118 = vunpack.c.l.b16 %v1106
      %v1119 = vunpack.c.l.b16 %v1107
      %v1120 = vunpack.c.l.b16 %v1108
      %v1121 = vpack.c.b16 %v1118, %v1117
      %v1122 = vpack.c.b16 %v1120, %v1119
      %v1126 = vsel %vm651, %v1104, 0
      %1128 = vmatpush.bf16.msra.mxu0 0
      %1129 = vmatpush.bf16.msra.mxu0 0
      %1130 = vmatpush.bf16.msra.mxu0 0
      %1131 = vmatpush.bf16.msra.mxu0 0
      %1132 = vmatpush.bf16.msra.mxu0 0
      %1133 = vmatpush.bf16.msra.mxu0 0
      %1134 = vmatpush.bf16.msra.mxu0 %v1122
      %1135 = vmatpush.bf16.msra.mxu0 %v1121
      %1136 = vmatmul.bf16.gmra.mxu0 %v1126
      %v1137 = vpop.f32.mrf.mxu0
      %v1138 = vadd.f32 %v1111, %v1137
      %v1139 = vpop.f32.mrf.mxu0
      %1140 = vdwg.mxu0
      %v1141 = vmul.f32 %v1138, 0.5
      %v1142 = vmul.f32 %v1138, 0.044715
      %v1143 = vmul.f32 %v1142, %v1138
      %v1144 = vmul.f32 %v1143, %v1138
      %v1145 = vadd.f32 %v1138, %v1144
      %v1146 = vmul.f32 %v1145, 0.7978846
      %v1147 = vtanh.pop %v1146
      %v1148 = vadd.f32 %v1147, 1.0
      %v1149 = vmul.f32 %v1141, %v1148
      %v1150 = vpack.c.bf16 %v1149, %v1149
      %v1151 = vld [vmem:[%s632] sm:$0xf]
      %v1152 = vld [vmem:[%s632 + $0x4] sm:$0xf]
      %v1153 = vld [vmem:[%s632 + $0x8] sm:$0xf]
      %v1154 = vld [vmem:[%s632 + $0xc] sm:$0xf]
      %v1155 = vld [vmem:[%s632 + $0x10] sm:$0xf]
      %v1156 = vld [vmem:[%s632 + $0x14] sm:$0xf]
      %v1157 = vld [vmem:[%s632 + $0x18] sm:$0xf]
      %v1158 = vld [vmem:[%s632 + $0x1c] sm:$0xf]
      %v1159 = vld [vmem:[%s632 + $0x20] sm:$0xf]
      %v1160 = vld [vmem:[%s632 + $0x24] sm:$0xf]
      %v1161 = vld [vmem:[%s632 + $0x28] sm:$0xf]
      %v1162 = vld [vmem:[%s632 + $0x2c] sm:$0xf]
      %v1163 = vld [vmem:[%s632 + $0x30] sm:$0xf]
      %v1164 = vld [vmem:[%s632 + $0x34] sm:$0xf]
      %v1165 = vld [vmem:[%s632 + $0x38] sm:$0xf]
      %v1166 = vld [vmem:[%s632 + $0x3c] sm:$0xf]
      %v1167 = vld [vmem:[%s635] sm:$0x1]
      %v1169 = vperm.slane %v1167, 0
      %v1187 = vunpack.c.l.b16 %v1151
      %v1188 = vunpack.c.l.b16 %v1152
      %v1189 = vunpack.c.l.b16 %v1153
      %v1190 = vunpack.c.l.b16 %v1154
      %v1191 = vunpack.c.l.b16 %v1155
      %v1192 = vunpack.c.l.b16 %v1156
      %v1193 = vunpack.c.l.b16 %v1157
      %v1194 = vunpack.c.l.b16 %v1158
      %v1195 = vunpack.c.l.b16 %v1159
      %v1196 = vunpack.c.l.b16 %v1160
      %v1197 = vunpack.c.l.b16 %v1161
      %v1198 = vunpack.c.l.b16 %v1162
      %v1199 = vunpack.c.l.b16 %v1163
      %v1200 = vunpack.c.l.b16 %v1164
      %v1201 = vunpack.c.l.b16 %v1165
      %v1202 = vunpack.c.l.b16 %v1166
      %v1203 = vpack.c.b16 %v1188, %v1187
      %v1204 = vpack.c.b16 %v1190, %v1189
      %v1205 = vpack.c.b16 %v1192, %v1191
      %v1206 = vpack.c.b16 %v1194, %v1193
      %v1207 = vpack.c.b16 %v1196, %v1195
      %v1208 = vpack.c.b16 %v1198, %v1197
      %v1209 = vpack.c.b16 %v1200, %v1199
      %v1210 = vpack.c.b16 %v1202, %v1201
      %1219 = vmatpush.bf16.msra.mxu0 %v1210
      %1220 = vmatpush.bf16.msra.mxu0 %v1209
      %1221 = vmatpush.bf16.msra.mxu0 %v1208
      %1222 = vmatpush.bf16.msra.mxu0 %v1207
      %1223 = vmatpush.bf16.msra.mxu0 %v1206
      %1224 = vmatpush.bf16.msra.mxu0 %v1205
      %1225 = vmatpush.bf16.msra.mxu0 %v1204
      %1226 = vmatpush.bf16.msra.mxu0 %v1203
      %1227 = vmatmul.bf16.gmra.mxu0 %v1150
      %v1228 = vpop.f32.mrf.mxu0
      %v1229 = vadd.f32 %v1169, %v1228
      %v1230 = vpop.f32.mrf.mxu0
      %1231 = vdwg.mxu0
      %v1232 = vadd.f32 %v1055, %v1229
      %1233 = vst.msk [vmem:[#allocation2] sm:$0xff] %vm651, %v1232
      %p1234 = scmp.eq.s32.totalorder %s29, 1
      // Predicated region
      $region77: #{gpt_forward.1} parent=71 // pred_check
        %p1235 = pneg %p1234
      $region78: #{gpt_forward.1} parent=71 // pred_check_branch
        %1237 = sbr.rel (%p1235) target = $region80
      $region79: #{gpt_forward.1} parent=71 // pred_region
        %v1238 = vld [vmem:[#allocation2] sm:$0xff]
        %1239 = vst.msk [vmem:[%s639] sm:$0xff] %vm651, %v1238
      $region80: #{gpt_forward.1} parent=71 // pred_fallthru
        _
      %p1240 = scmp.lt.s32.totalorder %s28, 1
      %s1241 = scalar_select %p1240, %s28, 1
      %s1242 = smul.addr %s1241, 8
      %s1243 = scalar_lea.vmem %s13, %s1242
      // Predicated region
      $region81: #{gpt_forward.1} parent=71 // pred_check
        %p1244 = pneg %p392
      $region82: #{gpt_forward.1} parent=71 // pred_check_branch
        %1246 = sbr.rel (%p1244) target = $region84
      $region83: #{gpt_forward.1} parent=71 // pred_region
        _
      $region84: #{gpt_forward.1} parent=71 // pred_fallthru
        _
    $region72: #{gpt_forward.1} parent=5 // pred_fallthru
      _
    %p1247 = scmp.le.s32.totalorder 2, %s19
    // Predicated region
    $region85: #{gpt_forward.1} parent=5 // pred_check
      %p1248 = pneg %p1247
    $region86: #{gpt_forward.1} parent=5 // pred_check_branch
      %1250 = sbr.rel (%p1248) target = $region88
    $region87: #{gpt_forward.1} parent=5 // pred_region
      %s1251 = ssub.s32 %s19, 2
      // Predicated region
      $region89: #{gpt_forward.1} parent=87 // pred_check
        %p1252 = pneg %p398
      $region90: #{gpt_forward.1} parent=87 // pred_check_branch
        %1254 = sbr.rel (%p1252) target = $region92
      $region91: #{gpt_forward.1} parent=87 // pred_region
        %p1255 = scmp.lt.s32.totalorder %s30, 1
        %s1256 = scalar_select %p1255, %s30, 1
        %s1257 = smul.addr %s1256, 8
        %s1258 = scalar_lea.vmem %s13, %s1257
      $region92: #{gpt_forward.1} parent=87 // pred_fallthru
        _
    $region88: #{gpt_forward.1} parent=5 // pred_fallthru
      _
  $region6: #{gpt_forward.1} parent=0 // loop_footer
    %s23 = sadd.s32 1, %s19
  $region7: #{gpt_forward.1} parent=0 // loop_footer_branch
    %18 = sbr.rel target = $region3
  $region8: #{gpt_forward.1} parent=0 // loop_exit
    _

</llo_original>
